<compile_context>
chip_gen: v5e
topology: v5e:2x2
jax: 0.10.0
libtpu: 0.0.40
codegen_flags: <defaults>
</compile_context>

<pallas_src>
import functools

import jax
import jax.numpy as jnp
from jax.experimental import pallas as pl
from jax.experimental.pallas import tpu as pltpu


# -----------------------------------------------------------------------------
# Fused kernel: conv1 -> conv2 -> (split concat-conv ∘ final-conv), NB samples
# per grid step folded onto the lane axis.
# -----------------------------------------------------------------------------
def _fcn_head_kernel(H, W, HW, NB, LPAD,
                     x_ref, mask_ref, w1_ref, w2_ref, b_ref, wa_ref, wb_ref,
                     o_ref, pad1_ref, pad2_ref, tap1_ref, tap2_ref):
    L = NB * HW
    Cin = x_ref.shape[1]
    C = w1_ref.shape[0]
    f32 = jnp.float32

    # Hoisted boundary masks (host-precomputed, identical for both conv layers).
    # Order matches the (dh, dw) loop below with the center tap skipped.
    mask_rows = [mask_ref[i:i + 1, :] for i in range(8)]

    def zero_pad_strips(pad_ref, cin):
        # Lane-aligned halo strips; keeps stale VMEM from injecting NaNs
        # through the masked taps (mask * NaN == NaN).
        pad_ref[:, :LPAD] = jnp.zeros((cin, LPAD), f32)
        pad_ref[:, LPAD + L:] = jnp.zeros((cin, LPAD), f32)

    def conv3x3_bias_relu(pad_ref, tap_ref, w_ref, bias, cin):
        # Stack the 9 shifted + SAME-masked taps along sublanes, then a single
        # matmul with contraction dim 9*cin (one MXU push/pop instead of nine).
        mi = 0
        for dh in (-1, 0, 1):
            for dw in (-1, 0, 1):
                t = (dh + 1) * 3 + (dw + 1)
                delta = dh * W + dw
                shifted = pad_ref[:, LPAD + delta:LPAD + delta + L]
                if dh == 0 and dw == 0:
                    tap_ref[t * cin:(t + 1) * cin, :] = shifted
                else:
                    tap_ref[t * cin:(t + 1) * cin, :] = shifted * mask_rows[mi]
                    mi += 1
        acc = jnp.dot(w_ref[...], tap_ref[...], preferred_element_type=f32)
        return jnp.maximum(acc + bias, 0.0)

    # --- layer 0: batch-fold the NB samples onto the lane axis while filling
    #     the padded line buffer (column i*HW + h*W + w belongs to sample i).
    zero_pad_strips(pad1_ref, Cin)
    for i in range(NB):                       # static Python unroll, HW-aligned
        pad1_ref[:, LPAD + i * HW:LPAD + (i + 1) * HW] = x_ref[i].astype(f32)

    # conv1 + folded BN + ReLU (scale already folded into w1; only bias left).
    y = conv3x3_bias_relu(pad1_ref, tap1_ref, w1_ref, b_ref[0:C, :], Cin)

    zero_pad_strips(pad2_ref, C)
    pad2_ref[:, LPAD:LPAD + L] = y
    y = conv3x3_bias_relu(pad2_ref, tap2_ref, w2_ref, b_ref[C:2 * C, :], C)

    # concat + concat_conv + final_conv fused into one linear map; the concat
    # is expressed by splitting the composed weight — never materialized.
    x0 = pad1_ref[:, LPAD:LPAD + L]
    out = (jnp.dot(wa_ref[...], x0, preferred_element_type=f32)
           + jnp.dot(wb_ref[...], y, preferred_element_type=f32)
           + b_ref[2 * C:, :])
    for i in range(NB):
        o_ref[i] = out[:, i * HW:(i + 1) * HW].astype(o_ref.dtype)


# -----------------------------------------------------------------------------
# Parameter prep: reference (HWIO / IO) layout -> kernel channel-major layout.
# BN scale is folded into the conv weights; the two activation-free 1x1 convs
# are pre-composed; all biases are packed into one operand.
# -----------------------------------------------------------------------------
def prepare_params(params, in_channels):
    conv_w, conv_b = [], []
    for (w, scale, bias) in params["convs"]:           # w: (3,3,Cin,Cout) HWIO
        cout, cin = w.shape[-1], w.shape[-2]
        # (Cout, 9*Cin), tap-major contraction, scale folded along Cout.
        w_flat = (jnp.transpose(w, (3, 0, 1, 2)).reshape(cout, 9 * cin)
                  * scale.reshape(-1, 1))
        conv_w.append(w_flat)
        conv_b.append(bias.reshape(-1, 1))
    # Compose the two 1x1 convs: out = cat @ (Wc @ Wf) + (bc @ Wf + bf)
    m = params["concat_w"] @ params["final_w"]                        # (Cin+C, K)
    bo = params["concat_b"] @ params["final_w"] + params["final_b"]   # (K,)
    return dict(
        w1=conv_w[0], w2=conv_w[1],
        wa=m[:in_channels].T,                 # (K, Cin)  acts on `original`
        wb=m[in_channels:].T,                 # (K, C)    acts on conv output
        bcat=jnp.concatenate([conv_b[0], conv_b[1], bo.reshape(-1, 1)], axis=0),
    )


def build_tap_masks(H, W, NB):
    """(8, NB*H*W) f32 SAME-padding validity masks for the 8 non-center taps."""
    h = jnp.arange(H).reshape(H, 1)
    w = jnp.arange(W).reshape(1, W)
    rows = []
    for dh in (-1, 0, 1):
        for dw in (-1, 0, 1):
            if dh == 0 and dw == 0:
                continue
            valid = ((h + dh >= 0) & (h + dh < H) & (w + dw >= 0) & (w + dw < W))
            rows.append(valid.reshape(1, H * W).astype(jnp.float32))
    m = jnp.concatenate(rows, axis=0)                  # (8, HW)
    return jnp.tile(m, (1, NB))                        # (8, NB*HW)


# -----------------------------------------------------------------------------
# Module forward: one pallas_call, NCHW in -> NCHW out (no wrapper transposes).
# -----------------------------------------------------------------------------
def simple_fcn_head_forward(x_nchw, params):
    N, Cin, H, W = x_nchw.shape
    HW = H * W
    # Keep 2 "parallel" grid blocks when the batch is even (feeds both v7x
    # TensorCores); otherwise fold the whole batch into a single step.
    n_blocks = 2 if (N >= 2 and N % 2 == 0) else 1
    NB = N // n_blocks
    L = NB * HW
    LPAD = max(128, ((W + 1 + 127) // 128) * 128)      # lane-aligned halo >= W+1

    kp = prepare_params(params, Cin)
    C = kp["w1"].shape[0]
    K = kp["wa"].shape[0]
    masks = build_tap_masks(H, W, NB)
    xf = x_nchw.reshape(N, Cin, HW)                    # NCHW flatten: free

    out = pl.pallas_call(
        functools.partial(_fcn_head_kernel, H, W, HW, NB, LPAD),
        out_shape=jax.ShapeDtypeStruct((N, K, HW), x_nchw.dtype),
        grid=(n_blocks,),
        in_specs=[
            pl.BlockSpec((NB, Cin, HW), lambda g: (g, 0, 0)),
            pl.BlockSpec((8, L), lambda g: (0, 0)),
            pl.BlockSpec((C, 9 * Cin), lambda g: (0, 0)),
            pl.BlockSpec((C, 9 * C), lambda g: (0, 0)),
            pl.BlockSpec((2 * C + K, 1), lambda g: (0, 0)),
            pl.BlockSpec((K, Cin), lambda g: (0, 0)),
            pl.BlockSpec((K, C), lambda g: (0, 0)),
        ],
        out_specs=pl.BlockSpec((NB, K, HW), lambda g: (g, 0, 0)),
        scratch_shapes=[
            pltpu.VMEM((Cin, L + 2 * LPAD), jnp.float32),   # line buffer, input
            pltpu.VMEM((C, L + 2 * LPAD), jnp.float32),     # line buffer, conv1 out
            pltpu.VMEM((9 * Cin, L), jnp.float32),          # stacked taps, conv1
            pltpu.VMEM((9 * C, L), jnp.float32),            # stacked taps, conv2
        ],
        compiler_params=pltpu.CompilerParams(
            dimension_semantics=("parallel",)),
    )(xf, masks, kp["w1"], kp["w2"], kp["bcat"], kp["wa"], kp["wb"])
    return out.reshape(N, K, H, W)                     # already NCHW


# -----------------------------------------------------------------------------
# Pure-JAX reference (same folded eval-mode math) for correctness check.
# -----------------------------------------------------------------------------
def reference_forward(x_nchw, params):
    x = jnp.transpose(x_nchw, (0, 2, 3, 1))
    original = x
    for (w, s, b) in params["convs"]:
        y = jax.lax.conv_general_dilated(
            x, w, (1, 1), "SAME",
            dimension_numbers=("NHWC", "HWIO", "NHWC"))
        x = jnp.maximum(y * s + b, 0.0)
    x = jnp.concatenate([original, x], axis=-1)
    x = jnp.einsum("nhwc,co->nhwo", x, params["concat_w"]) + params["concat_b"]
    x = jnp.einsum("nhwc,co->nhwo", x, params["final_w"]) + params["final_b"]
    return jnp.transpose(x, (0, 3, 1, 2))


# -----------------------------------------------------------------------------
# Deterministic synthetic parameter init (shapes from the nn.Module __init__).
# -----------------------------------------------------------------------------
def init_params(key, in_channels, channels, num_classes, num_convs=2, eps=1e-5):
    keys = iter(jax.random.split(key, 6 * num_convs + 4))
    convs = []
    cin = in_channels
    for _ in range(num_convs):
        w = 0.1 * jax.random.normal(next(keys), (3, 3, cin, channels), jnp.float32)
        b_conv = 0.1 * jax.random.normal(next(keys), (channels,), jnp.float32)
        gamma = 1.0 + 0.1 * jax.random.normal(next(keys), (channels,), jnp.float32)
        beta = 0.1 * jax.random.normal(next(keys), (channels,), jnp.float32)
        mean = 0.1 * jax.random.normal(next(keys), (channels,), jnp.float32)
        var = 0.5 + 0.1 * jnp.abs(jax.random.normal(next(keys), (channels,), jnp.float32))
        scale = gamma / jnp.sqrt(var + eps)          # fold BN into affine
        bias = (b_conv - mean) * scale + beta        # fold conv bias + BN
        convs.append((w, scale, bias))
        cin = channels
    concat_w = 0.1 * jax.random.normal(next(keys), (in_channels + channels, channels), jnp.float32)
    concat_b = 0.1 * jax.random.normal(next(keys), (channels,), jnp.float32)
    final_w = 0.1 * jax.random.normal(next(keys), (channels, num_classes), jnp.float32)
    final_b = 0.1 * jax.random.normal(next(keys), (num_classes,), jnp.float32)
    return dict(convs=convs, concat_w=concat_w, concat_b=concat_b,
                final_w=final_w, final_b=final_b)


if __name__ == "__main__":
    in_channels, channels, num_classes, H, W = 4, 8, 3, 16, 16

    root = jax.random.PRNGKey(0)
    k_x, k_p = jax.random.split(root)
    params = init_params(k_p, in_channels, channels, num_classes)
    fwd = jax.jit(simple_fcn_head_forward)

    # Even batch: 2 parallel grid blocks, 2 samples folded per block.
    x = jax.random.normal(k_x, (4, in_channels, H, W), jnp.float32)   # NCHW
    out = jax.block_until_ready(fwd(x, params))
    assert out.shape == (4, num_classes, H, W), out.shape
    ref = jax.block_until_ready(reference_forward(x, params))
    assert jnp.allclose(out, ref, rtol=2e-3, atol=2e-3), (
        float(jnp.max(jnp.abs(out - ref))))

    # Odd batch: single grid block with all 3 samples folded on the lane axis.
    x3 = jax.random.normal(k_x, (3, in_channels, H, W), jnp.float32)
    out3 = jax.block_until_ready(fwd(x3, params))
    ref3 = jax.block_until_ready(reference_forward(x3, params))
    assert jnp.allclose(out3, ref3, rtol=2e-3, atol=2e-3), (
        float(jnp.max(jnp.abs(out3 - ref3))))

    print("KERNEL_OK")
</pallas_src>

<mosaic_0001>
module attributes {stable_mosaic.version = 11 : i64} {
  func.func @_fcn_head_kernel(%arg0: i32, %arg1: memref<2x4x256xf32, #tpu.memory_space<vmem>>, %arg2: memref<8x512xf32, #tpu.memory_space<vmem>>, %arg3: memref<8x36xf32, #tpu.memory_space<vmem>>, %arg4: memref<8x72xf32, #tpu.memory_space<vmem>>, %arg5: memref<19x1xf32, #tpu.memory_space<vmem>>, %arg6: memref<3x4xf32, #tpu.memory_space<vmem>>, %arg7: memref<3x8xf32, #tpu.memory_space<vmem>>, %arg8: memref<2x3x256xf32, #tpu.memory_space<vmem>>, %arg9: memref<4x768xf32, #tpu.memory_space<vmem>>, %arg10: memref<8x768xf32, #tpu.memory_space<vmem>>, %arg11: memref<36x512xf32, #tpu.memory_space<vmem>>, %arg12: memref<72x512xf32, #tpu.memory_space<vmem>>) attributes {dimension_semantics = [#tpu.dimension_semantics<parallel>], iteration_bounds = array<i64: 2>, scalar_prefetch = 0 : i64, scratch_operands = 4 : i64, tpu.core_type = #tpu.core_type<tc>, window_params = [{transform_indices = @transform_0, window_bounds = array<i64: 2, 4, 256>}, {pipeline_mode = #tpu.pipeline_mode<synchronous>, transform_indices = @transform_1, window_bounds = array<i64: 8, 512>}, {pipeline_mode = #tpu.pipeline_mode<synchronous>, transform_indices = @transform_2, window_bounds = array<i64: 8, 36>}, {pipeline_mode = #tpu.pipeline_mode<synchronous>, transform_indices = @transform_3, window_bounds = array<i64: 8, 72>}, {pipeline_mode = #tpu.pipeline_mode<synchronous>, transform_indices = @transform_4, window_bounds = array<i64: 19, 1>}, {pipeline_mode = #tpu.pipeline_mode<synchronous>, transform_indices = @transform_5, window_bounds = array<i64: 3, 4>}, {pipeline_mode = #tpu.pipeline_mode<synchronous>, transform_indices = @transform_6, window_bounds = array<i64: 3, 8>}, {transform_indices = @transform_7, window_bounds = array<i64: 2, 3, 256>}]} {
    %c0 = arith.constant 0 : index
    %c0_0 = arith.constant 0 : index
    %0 = vector.load %arg2[%c0, %c0_0] : memref<8x512xf32, #tpu.memory_space<vmem>>, vector<1x512xf32>
    %c1 = arith.constant 1 : index
    %c0_1 = arith.constant 0 : index
    %1 = vector.load %arg2[%c1, %c0_1] : memref<8x512xf32, #tpu.memory_space<vmem>>, vector<1x512xf32>
    %c2 = arith.constant 2 : index
    %c0_2 = arith.constant 0 : index
    %2 = vector.load %arg2[%c2, %c0_2] : memref<8x512xf32, #tpu.memory_space<vmem>>, vector<1x512xf32>
    %c3 = arith.constant 3 : index
    %c0_3 = arith.constant 0 : index
    %3 = vector.load %arg2[%c3, %c0_3] : memref<8x512xf32, #tpu.memory_space<vmem>>, vector<1x512xf32>
    %c4 = arith.constant 4 : index
    %c0_4 = arith.constant 0 : index
    %4 = vector.load %arg2[%c4, %c0_4] : memref<8x512xf32, #tpu.memory_space<vmem>>, vector<1x512xf32>
    %c5 = arith.constant 5 : index
    %c0_5 = arith.constant 0 : index
    %5 = vector.load %arg2[%c5, %c0_5] : memref<8x512xf32, #tpu.memory_space<vmem>>, vector<1x512xf32>
    %c6 = arith.constant 6 : index
    %c0_6 = arith.constant 0 : index
    %6 = vector.load %arg2[%c6, %c0_6] : memref<8x512xf32, #tpu.memory_space<vmem>>, vector<1x512xf32>
    %c7 = arith.constant 7 : index
    %c0_7 = arith.constant 0 : index
    %7 = vector.load %arg2[%c7, %c0_7] : memref<8x512xf32, #tpu.memory_space<vmem>>, vector<1x512xf32>
    %cst = arith.constant 0.000000e+00 : f32
    %8 = vector.broadcast %cst : f32 to vector<4x128xf32>
    %c0_8 = arith.constant 0 : index
    %c0_9 = arith.constant 0 : index
    %9 = vector.load %arg9[%c0_8, %c0_9] : memref<4x768xf32, #tpu.memory_space<vmem>>, vector<4x128xf32>
    tpu.vector_store %arg9[%c0_8, %c0_9], %8 {strides = array<i32>} : memref<4x768xf32, #tpu.memory_space<vmem>>, vector<4x128xf32>,
    %cst_10 = arith.constant 0.000000e+00 : f32
    %10 = vector.broadcast %cst_10 : f32 to vector<4x128xf32>
    %c0_11 = arith.constant 0 : index
    %c640 = arith.constant 640 : index
    %11 = vector.load %arg9[%c0_11, %c640] : memref<4x768xf32, #tpu.memory_space<vmem>>, vector<4x128xf32>
    tpu.vector_store %arg9[%c0_11, %c640], %10 {strides = array<i32>} : memref<4x768xf32, #tpu.memory_space<vmem>>, vector<4x128xf32>,
    %c0_12 = arith.constant 0 : index
    %c0_13 = arith.constant 0 : index
    %c0_14 = arith.constant 0 : index
    %12 = vector.load %arg1[%c0_12, %c0_13, %c0_14] : memref<2x4x256xf32, #tpu.memory_space<vmem>>, vector<1x4x256xf32>
    %13 = vector.shape_cast %12 : vector<1x4x256xf32> to vector<4x256xf32>
    %c0_15 = arith.constant 0 : index
    %c128 = arith.constant 128 : index
    %14 = vector.load %arg9[%c0_15, %c128] : memref<4x768xf32, #tpu.memory_space<vmem>>, vector<4x256xf32>
    tpu.vector_store %arg9[%c0_15, %c128], %13 {strides = array<i32>} : memref<4x768xf32, #tpu.memory_space<vmem>>, vector<4x256xf32>,
    %c1_16 = arith.constant 1 : index
    %c0_17 = arith.constant 0 : index
    %c0_18 = arith.constant 0 : index
    %15 = vector.load %arg1[%c1_16, %c0_17, %c0_18] : memref<2x4x256xf32, #tpu.memory_space<vmem>>, vector<1x4x256xf32>
    %16 = vector.shape_cast %15 : vector<1x4x256xf32> to vector<4x256xf32>
    %c0_19 = arith.constant 0 : index
    %c384 = arith.constant 384 : index
    %17 = vector.load %arg9[%c0_19, %c384] : memref<4x768xf32, #tpu.memory_space<vmem>>, vector<4x256xf32>
    tpu.vector_store %arg9[%c0_19, %c384], %16 {strides = array<i32>} : memref<4x768xf32, #tpu.memory_space<vmem>>, vector<4x256xf32>,
    %c0_20 = arith.constant 0 : index
    %c0_21 = arith.constant 0 : index
    %18 = vector.load %arg5[%c0_20, %c0_21] : memref<19x1xf32, #tpu.memory_space<vmem>>, vector<8x1xf32>
    %c0_22 = arith.constant 0 : index
    %c111 = arith.constant 111 : index
    %19 = vector.load %arg9[%c0_22, %c111] : memref<4x768xf32, #tpu.memory_space<vmem>>, vector<4x512xf32>
    %20 = vector.broadcast %0 : vector<1x512xf32> to vector<4x512xf32>
    %21 = arith.mulf %19, %20 : vector<4x512xf32>
    %c0_23 = arith.constant 0 : index
    %c0_24 = arith.constant 0 : index
    %22 = vector.load %arg11[%c0_23, %c0_24] : memref<36x512xf32, #tpu.memory_space<vmem>>, vector<4x512xf32>
    tpu.vector_store %arg11[%c0_23, %c0_24], %21 {strides = array<i32>} : memref<36x512xf32, #tpu.memory_space<vmem>>, vector<4x512xf32>,
    %c0_25 = arith.constant 0 : index
    %c112 = arith.constant 112 : index
    %23 = vector.load %arg9[%c0_25, %c112] : memref<4x768xf32, #tpu.memory_space<vmem>>, vector<4x512xf32>
    %24 = vector.broadcast %1 : vector<1x512xf32> to vector<4x512xf32>
    %25 = arith.mulf %23, %24 : vector<4x512xf32>
    %c4_26 = arith.constant 4 : index
    %c0_27 = arith.constant 0 : index
    %26 = vector.load %arg11[%c4_26, %c0_27] : memref<36x512xf32, #tpu.memory_space<vmem>>, vector<4x512xf32>
    tpu.vector_store %arg11[%c4_26, %c0_27], %25 {strides = array<i32>} : memref<36x512xf32, #tpu.memory_space<vmem>>, vector<4x512xf32>,
    %c0_28 = arith.constant 0 : index
    %c113 = arith.constant 113 : index
    %27 = vector.load %arg9[%c0_28, %c113] : memref<4x768xf32, #tpu.memory_space<vmem>>, vector<4x512xf32>
    %28 = vector.broadcast %2 : vector<1x512xf32> to vector<4x512xf32>
    %29 = arith.mulf %27, %28 : vector<4x512xf32>
    %c8 = arith.constant 8 : index
    %c0_29 = arith.constant 0 : index
    %30 = vector.load %arg11[%c8, %c0_29] : memref<36x512xf32, #tpu.memory_space<vmem>>, vector<4x512xf32>
    tpu.vector_store %arg11[%c8, %c0_29], %29 {strides = array<i32>} : memref<36x512xf32, #tpu.memory_space<vmem>>, vector<4x512xf32>,
    %c0_30 = arith.constant 0 : index
    %c127 = arith.constant 127 : index
    %31 = vector.load %arg9[%c0_30, %c127] : memref<4x768xf32, #tpu.memory_space<vmem>>, vector<4x512xf32>
    %32 = vector.broadcast %3 : vector<1x512xf32> to vector<4x512xf32>
    %33 = arith.mulf %31, %32 : vector<4x512xf32>
    %c12 = arith.constant 12 : index
    %c0_31 = arith.constant 0 : index
    %34 = vector.load %arg11[%c12, %c0_31] : memref<36x512xf32, #tpu.memory_space<vmem>>, vector<4x512xf32>
    tpu.vector_store %arg11[%c12, %c0_31], %33 {strides = array<i32>} : memref<36x512xf32, #tpu.memory_space<vmem>>, vector<4x512xf32>,
    %c0_32 = arith.constant 0 : index
    %c128_33 = arith.constant 128 : index
    %35 = vector.load %arg9[%c0_32, %c128_33] : memref<4x768xf32, #tpu.memory_space<vmem>>, vector<4x512xf32>
    %c16 = arith.constant 16 : index
    %c0_34 = arith.constant 0 : index
    %36 = vector.load %arg11[%c16, %c0_34] : memref<36x512xf32, #tpu.memory_space<vmem>>, vector<4x512xf32>
    tpu.vector_store %arg11[%c16, %c0_34], %35 {strides = array<i32>} : memref<36x512xf32, #tpu.memory_space<vmem>>, vector<4x512xf32>,
    %c0_35 = arith.constant 0 : index
    %c129 = arith.constant 129 : index
    %37 = vector.load %arg9[%c0_35, %c129] : memref<4x768xf32, #tpu.memory_space<vmem>>, vector<4x512xf32>
    %38 = vector.broadcast %4 : vector<1x512xf32> to vector<4x512xf32>
    %39 = arith.mulf %37, %38 : vector<4x512xf32>
    %c20 = arith.constant 20 : index
    %c0_36 = arith.constant 0 : index
    %40 = vector.load %arg11[%c20, %c0_36] : memref<36x512xf32, #tpu.memory_space<vmem>>, vector<4x512xf32>
    tpu.vector_store %arg11[%c20, %c0_36], %39 {strides = array<i32>} : memref<36x512xf32, #tpu.memory_space<vmem>>, vector<4x512xf32>,
    %c0_37 = arith.constant 0 : index
    %c143 = arith.constant 143 : index
    %41 = vector.load %arg9[%c0_37, %c143] : memref<4x768xf32, #tpu.memory_space<vmem>>, vector<4x512xf32>
    %42 = vector.broadcast %5 : vector<1x512xf32> to vector<4x512xf32>
    %43 = arith.mulf %41, %42 : vector<4x512xf32>
    %c24 = arith.constant 24 : index
    %c0_38 = arith.constant 0 : index
    %44 = vector.load %arg11[%c24, %c0_38] : memref<36x512xf32, #tpu.memory_space<vmem>>, vector<4x512xf32>
    tpu.vector_store %arg11[%c24, %c0_38], %43 {strides = array<i32>} : memref<36x512xf32, #tpu.memory_space<vmem>>, vector<4x512xf32>,
    %c0_39 = arith.constant 0 : index
    %c144 = arith.constant 144 : index
    %45 = vector.load %arg9[%c0_39, %c144] : memref<4x768xf32, #tpu.memory_space<vmem>>, vector<4x512xf32>
    %46 = vector.broadcast %6 : vector<1x512xf32> to vector<4x512xf32>
    %47 = arith.mulf %45, %46 : vector<4x512xf32>
    %c28 = arith.constant 28 : index
    %c0_40 = arith.constant 0 : index
    %48 = vector.load %arg11[%c28, %c0_40] : memref<36x512xf32, #tpu.memory_space<vmem>>, vector<4x512xf32>
    tpu.vector_store %arg11[%c28, %c0_40], %47 {strides = array<i32>} : memref<36x512xf32, #tpu.memory_space<vmem>>, vector<4x512xf32>,
    %c0_41 = arith.constant 0 : index
    %c145 = arith.constant 145 : index
    %49 = vector.load %arg9[%c0_41, %c145] : memref<4x768xf32, #tpu.memory_space<vmem>>, vector<4x512xf32>
    %50 = vector.broadcast %7 : vector<1x512xf32> to vector<4x512xf32>
    %51 = arith.mulf %49, %50 : vector<4x512xf32>
    %c32 = arith.constant 32 : index
    %c0_42 = arith.constant 0 : index
    %52 = vector.load %arg11[%c32, %c0_42] : memref<36x512xf32, #tpu.memory_space<vmem>>, vector<4x512xf32>
    tpu.vector_store %arg11[%c32, %c0_42], %51 {strides = array<i32>} : memref<36x512xf32, #tpu.memory_space<vmem>>, vector<4x512xf32>,
    %c0_43 = arith.constant 0 : index
    %c0_44 = arith.constant 0 : index
    %53 = vector.load %arg3[%c0_43, %c0_44] : memref<8x36xf32, #tpu.memory_space<vmem>>, vector<8x36xf32>
    %c0_45 = arith.constant 0 : index
    %c0_46 = arith.constant 0 : index
    %54 = vector.load %arg11[%c0_45, %c0_46] : memref<36x512xf32, #tpu.memory_space<vmem>>, vector<36x512xf32>
    %cst_47 = arith.constant dense<0.000000e+00> : vector<8x512xf32>
    %55 = tpu.matmul %53, %54, %cst_47 {dimension_numbers = #tpu.dot_dimension_numbers<[1], [0], [0], [1], [0, 0, 1, 1], [], []>} : vector<8x36xf32>, vector<36x512xf32>, vector<8x512xf32> -> vector<8x512xf32>
    %56 = vector.broadcast %18 : vector<8x1xf32> to vector<8x512xf32>
    %57 = arith.addf %55, %56 : vector<8x512xf32>
    %cst_48 = arith.constant 0.000000e+00 : f32
    %58 = vector.broadcast %cst_48 : f32 to vector<8x512xf32>
    %59 = arith.maximumf %57, %58 : vector<8x512xf32>
    %cst_49 = arith.constant 0.000000e+00 : f32
    %60 = vector.broadcast %cst_49 : f32 to vector<8x128xf32>
    %c0_50 = arith.constant 0 : index
    %c0_51 = arith.constant 0 : index
    %61 = vector.load %arg10[%c0_50, %c0_51] : memref<8x768xf32, #tpu.memory_space<vmem>>, vector<8x128xf32>
    tpu.vector_store %arg10[%c0_50, %c0_51], %60 {strides = array<i32>} : memref<8x768xf32, #tpu.memory_space<vmem>>, vector<8x128xf32>,
    %cst_52 = arith.constant 0.000000e+00 : f32
    %62 = vector.broadcast %cst_52 : f32 to vector<8x128xf32>
    %c0_53 = arith.constant 0 : index
    %c640_54 = arith.constant 640 : index
    %63 = vector.load %arg10[%c0_53, %c640_54] : memref<8x768xf32, #tpu.memory_space<vmem>>, vector<8x128xf32>
    tpu.vector_store %arg10[%c0_53, %c640_54], %62 {strides = array<i32>} : memref<8x768xf32, #tpu.memory_space<vmem>>, vector<8x128xf32>,
    %c0_55 = arith.constant 0 : index
    %c128_56 = arith.constant 128 : index
    %64 = vector.load %arg10[%c0_55, %c128_56] : memref<8x768xf32, #tpu.memory_space<vmem>>, vector<8x512xf32>
    tpu.vector_store %arg10[%c0_55, %c128_56], %59 {strides = array<i32>} : memref<8x768xf32, #tpu.memory_space<vmem>>, vector<8x512xf32>,
    %c8_57 = arith.constant 8 : index
    %c0_58 = arith.constant 0 : index
    %65 = vector.load %arg5[%c8_57, %c0_58] : memref<19x1xf32, #tpu.memory_space<vmem>>, vector<8x1xf32>
    %c0_59 = arith.constant 0 : index
    %c111_60 = arith.constant 111 : index
    %66 = vector.load %arg10[%c0_59, %c111_60] : memref<8x768xf32, #tpu.memory_space<vmem>>, vector<8x512xf32>
    %67 = vector.broadcast %0 : vector<1x512xf32> to vector<8x512xf32>
    %68 = arith.mulf %66, %67 : vector<8x512xf32>
    %c0_61 = arith.constant 0 : index
    %c0_62 = arith.constant 0 : index
    %69 = vector.load %arg12[%c0_61, %c0_62] : memref<72x512xf32, #tpu.memory_space<vmem>>, vector<8x512xf32>
    tpu.vector_store %arg12[%c0_61, %c0_62], %68 {strides = array<i32>} : memref<72x512xf32, #tpu.memory_space<vmem>>, vector<8x512xf32>,
    %c0_63 = arith.constant 0 : index
    %c112_64 = arith.constant 112 : index
    %70 = vector.load %arg10[%c0_63, %c112_64] : memref<8x768xf32, #tpu.memory_space<vmem>>, vector<8x512xf32>
    %71 = vector.broadcast %1 : vector<1x512xf32> to vector<8x512xf32>
    %72 = arith.mulf %70, %71 : vector<8x512xf32>
    %c8_65 = arith.constant 8 : index
    %c0_66 = arith.constant 0 : index
    %73 = vector.load %arg12[%c8_65, %c0_66] : memref<72x512xf32, #tpu.memory_space<vmem>>, vector<8x512xf32>
    tpu.vector_store %arg12[%c8_65, %c0_66], %72 {strides = array<i32>} : memref<72x512xf32, #tpu.memory_space<vmem>>, vector<8x512xf32>,
    %c0_67 = arith.constant 0 : index
    %c113_68 = arith.constant 113 : index
    %74 = vector.load %arg10[%c0_67, %c113_68] : memref<8x768xf32, #tpu.memory_space<vmem>>, vector<8x512xf32>
    %75 = vector.broadcast %2 : vector<1x512xf32> to vector<8x512xf32>
    %76 = arith.mulf %74, %75 : vector<8x512xf32>
    %c16_69 = arith.constant 16 : index
    %c0_70 = arith.constant 0 : index
    %77 = vector.load %arg12[%c16_69, %c0_70] : memref<72x512xf32, #tpu.memory_space<vmem>>, vector<8x512xf32>
    tpu.vector_store %arg12[%c16_69, %c0_70], %76 {strides = array<i32>} : memref<72x512xf32, #tpu.memory_space<vmem>>, vector<8x512xf32>,
    %c0_71 = arith.constant 0 : index
    %c127_72 = arith.constant 127 : index
    %78 = vector.load %arg10[%c0_71, %c127_72] : memref<8x768xf32, #tpu.memory_space<vmem>>, vector<8x512xf32>
    %79 = vector.broadcast %3 : vector<1x512xf32> to vector<8x512xf32>
    %80 = arith.mulf %78, %79 : vector<8x512xf32>
    %c24_73 = arith.constant 24 : index
    %c0_74 = arith.constant 0 : index
    %81 = vector.load %arg12[%c24_73, %c0_74] : memref<72x512xf32, #tpu.memory_space<vmem>>, vector<8x512xf32>
    tpu.vector_store %arg12[%c24_73, %c0_74], %80 {strides = array<i32>} : memref<72x512xf32, #tpu.memory_space<vmem>>, vector<8x512xf32>,
    %c0_75 = arith.constant 0 : index
    %c128_76 = arith.constant 128 : index
    %82 = vector.load %arg10[%c0_75, %c128_76] : memref<8x768xf32, #tpu.memory_space<vmem>>, vector<8x512xf32>
    %c32_77 = arith.constant 32 : index
    %c0_78 = arith.constant 0 : index
    %83 = vector.load %arg12[%c32_77, %c0_78] : memref<72x512xf32, #tpu.memory_space<vmem>>, vector<8x512xf32>
    tpu.vector_store %arg12[%c32_77, %c0_78], %82 {strides = array<i32>} : memref<72x512xf32, #tpu.memory_space<vmem>>, vector<8x512xf32>,
    %c0_79 = arith.constant 0 : index
    %c129_80 = arith.constant 129 : index
    %84 = vector.load %arg10[%c0_79, %c129_80] : memref<8x768xf32, #tpu.memory_space<vmem>>, vector<8x512xf32>
    %85 = vector.broadcast %4 : vector<1x512xf32> to vector<8x512xf32>
    %86 = arith.mulf %84, %85 : vector<8x512xf32>
    %c40 = arith.constant 40 : index
    %c0_81 = arith.constant 0 : index
    %87 = vector.load %arg12[%c40, %c0_81] : memref<72x512xf32, #tpu.memory_space<vmem>>, vector<8x512xf32>
    tpu.vector_store %arg12[%c40, %c0_81], %86 {strides = array<i32>} : memref<72x512xf32, #tpu.memory_space<vmem>>, vector<8x512xf32>,
    %c0_82 = arith.constant 0 : index
    %c143_83 = arith.constant 143 : index
    %88 = vector.load %arg10[%c0_82, %c143_83] : memref<8x768xf32, #tpu.memory_space<vmem>>, vector<8x512xf32>
    %89 = vector.broadcast %5 : vector<1x512xf32> to vector<8x512xf32>
    %90 = arith.mulf %88, %89 : vector<8x512xf32>
    %c48 = arith.constant 48 : index
    %c0_84 = arith.constant 0 : index
    %91 = vector.load %arg12[%c48, %c0_84] : memref<72x512xf32, #tpu.memory_space<vmem>>, vector<8x512xf32>
    tpu.vector_store %arg12[%c48, %c0_84], %90 {strides = array<i32>} : memref<72x512xf32, #tpu.memory_space<vmem>>, vector<8x512xf32>,
    %c0_85 = arith.constant 0 : index
    %c144_86 = arith.constant 144 : index
    %92 = vector.load %arg10[%c0_85, %c144_86] : memref<8x768xf32, #tpu.memory_space<vmem>>, vector<8x512xf32>
    %93 = vector.broadcast %6 : vector<1x512xf32> to vector<8x512xf32>
    %94 = arith.mulf %92, %93 : vector<8x512xf32>
    %c56 = arith.constant 56 : index
    %c0_87 = arith.constant 0 : index
    %95 = vector.load %arg12[%c56, %c0_87] : memref<72x512xf32, #tpu.memory_space<vmem>>, vector<8x512xf32>
    tpu.vector_store %arg12[%c56, %c0_87], %94 {strides = array<i32>} : memref<72x512xf32, #tpu.memory_space<vmem>>, vector<8x512xf32>,
    %c0_88 = arith.constant 0 : index
    %c145_89 = arith.constant 145 : index
    %96 = vector.load %arg10[%c0_88, %c145_89] : memref<8x768xf32, #tpu.memory_space<vmem>>, vector<8x512xf32>
    %97 = vector.broadcast %7 : vector<1x512xf32> to vector<8x512xf32>
    %98 = arith.mulf %96, %97 : vector<8x512xf32>
    %c64 = arith.constant 64 : index
    %c0_90 = arith.constant 0 : index
    %99 = vector.load %arg12[%c64, %c0_90] : memref<72x512xf32, #tpu.memory_space<vmem>>, vector<8x512xf32>
    tpu.vector_store %arg12[%c64, %c0_90], %98 {strides = array<i32>} : memref<72x512xf32, #tpu.memory_space<vmem>>, vector<8x512xf32>,
    %c0_91 = arith.constant 0 : index
    %c0_92 = arith.constant 0 : index
    %100 = vector.load %arg4[%c0_91, %c0_92] : memref<8x72xf32, #tpu.memory_space<vmem>>, vector<8x72xf32>
    %c0_93 = arith.constant 0 : index
    %c0_94 = arith.constant 0 : index
    %101 = vector.load %arg12[%c0_93, %c0_94] : memref<72x512xf32, #tpu.memory_space<vmem>>, vector<72x512xf32>
    %cst_95 = arith.constant dense<0.000000e+00> : vector<8x512xf32>
    %102 = tpu.matmul %100, %101, %cst_95 {dimension_numbers = #tpu.dot_dimension_numbers<[1], [0], [0], [1], [0, 0, 1, 1], [], []>} : vector<8x72xf32>, vector<72x512xf32>, vector<8x512xf32> -> vector<8x512xf32>
    %103 = vector.broadcast %65 : vector<8x1xf32> to vector<8x512xf32>
    %104 = arith.addf %102, %103 : vector<8x512xf32>
    %cst_96 = arith.constant 0.000000e+00 : f32
    %105 = vector.broadcast %cst_96 : f32 to vector<8x512xf32>
    %106 = arith.maximumf %104, %105 : vector<8x512xf32>
    %c0_97 = arith.constant 0 : index
    %c128_98 = arith.constant 128 : index
    %107 = vector.load %arg9[%c0_97, %c128_98] : memref<4x768xf32, #tpu.memory_space<vmem>>, vector<4x512xf32>
    %c0_99 = arith.constant 0 : index
    %c0_100 = arith.constant 0 : index
    %108 = vector.load %arg6[%c0_99, %c0_100] : memref<3x4xf32, #tpu.memory_space<vmem>>, vector<3x4xf32>
    %cst_101 = arith.constant dense<0.000000e+00> : vector<3x512xf32>
    %109 = tpu.matmul %108, %107, %cst_101 {dimension_numbers = #tpu.dot_dimension_numbers<[1], [0], [0], [1], [0, 0, 1, 1], [], []>} : vector<3x4xf32>, vector<4x512xf32>, vector<3x512xf32> -> vector<3x512xf32>
    %c0_102 = arith.constant 0 : index
    %c0_103 = arith.constant 0 : index
    %110 = vector.load %arg7[%c0_102, %c0_103] : memref<3x8xf32, #tpu.memory_space<vmem>>, vector<3x8xf32>
    %cst_104 = arith.constant dense<0.000000e+00> : vector<3x512xf32>
    %111 = tpu.matmul %110, %106, %cst_104 {dimension_numbers = #tpu.dot_dimension_numbers<[1], [0], [0], [1], [0, 0, 1, 1], [], []>} : vector<3x8xf32>, vector<8x512xf32>, vector<3x512xf32> -> vector<3x512xf32>
    %112 = arith.addf %109, %111 : vector<3x512xf32>
    %c16_105 = arith.constant 16 : index
    %c0_106 = arith.constant 0 : index
    %113 = vector.load %arg5[%c16_105, %c0_106] : memref<19x1xf32, #tpu.memory_space<vmem>>, vector<3x1xf32>
    %114 = vector.broadcast %113 : vector<3x1xf32> to vector<3x512xf32>
    %115 = arith.addf %112, %114 : vector<3x512xf32>
    %116 = vector.extract_strided_slice %115 {offsets = [0, 0], sizes = [3, 256], strides = [1, 1]} : vector<3x512xf32> to vector<3x256xf32>
    %c0_107 = arith.constant 0 : index
    %c0_108 = arith.constant 0 : index
    %c0_109 = arith.constant 0 : index
    %117 = vector.load %arg8[%c0_107, %c0_108, %c0_109] : memref<2x3x256xf32, #tpu.memory_space<vmem>>, vector<1x3x256xf32>
    %118 = vector.shape_cast %117 : vector<1x3x256xf32> to vector<3x256xf32>
    %119 = vector.shape_cast %116 : vector<3x256xf32> to vector<1x3x256xf32>
    tpu.vector_store %arg8[%c0_107, %c0_108, %c0_109], %119 {strides = array<i32>} : memref<2x3x256xf32, #tpu.memory_space<vmem>>, vector<1x3x256xf32>,
    %120 = vector.extract_strided_slice %115 {offsets = [0, 256], sizes = [3, 256], strides = [1, 1]} : vector<3x512xf32> to vector<3x256xf32>
    %c1_110 = arith.constant 1 : index
    %c0_111 = arith.constant 0 : index
    %c0_112 = arith.constant 0 : index
    %121 = vector.load %arg8[%c1_110, %c0_111, %c0_112] : memref<2x3x256xf32, #tpu.memory_space<vmem>>, vector<1x3x256xf32>
    %122 = vector.shape_cast %121 : vector<1x3x256xf32> to vector<3x256xf32>
    %123 = vector.shape_cast %120 : vector<3x256xf32> to vector<1x3x256xf32>
    tpu.vector_store %arg8[%c1_110, %c0_111, %c0_112], %123 {strides = array<i32>} : memref<2x3x256xf32, #tpu.memory_space<vmem>>, vector<1x3x256xf32>,
    return
  }
  func.func @transform_0(%arg0: i32) -> (i32, i32, i32) {
    %c0_i32 = arith.constant 0 : i32
    %c0_i32_0 = arith.constant 0 : i32
    %c0_i32_1 = arith.constant 0 : i32
    return %arg0, %c0_i32, %c0_i32_0 : i32, i32, i32
  }
  func.func @transform_1(%arg0: i32) -> (i32, i32) {
    %c0_i32 = arith.constant 0 : i32
    %c0_i32_0 = arith.constant 0 : i32
    %c0_i32_1 = arith.constant 0 : i32
    return %c0_i32, %c0_i32_0 : i32, i32
  }
  func.func @transform_2(%arg0: i32) -> (i32, i32) {
    %c0_i32 = arith.constant 0 : i32
    %c0_i32_0 = arith.constant 0 : i32
    %c0_i32_1 = arith.constant 0 : i32
    return %c0_i32, %c0_i32_0 : i32, i32
  }
  func.func @transform_3(%arg0: i32) -> (i32, i32) {
    %c0_i32 = arith.constant 0 : i32
    %c0_i32_0 = arith.constant 0 : i32
    %c0_i32_1 = arith.constant 0 : i32
    return %c0_i32, %c0_i32_0 : i32, i32
  }
  func.func @transform_4(%arg0: i32) -> (i32, i32) {
    %c0_i32 = arith.constant 0 : i32
    %c0_i32_0 = arith.constant 0 : i32
    %c0_i32_1 = arith.constant 0 : i32
    return %c0_i32, %c0_i32_0 : i32, i32
  }
  func.func @transform_5(%arg0: i32) -> (i32, i32) {
    %c0_i32 = arith.constant 0 : i32
    %c0_i32_0 = arith.constant 0 : i32
    %c0_i32_1 = arith.constant 0 : i32
    return %c0_i32, %c0_i32_0 : i32, i32
  }
  func.func @transform_6(%arg0: i32) -> (i32, i32) {
    %c0_i32 = arith.constant 0 : i32
    %c0_i32_0 = arith.constant 0 : i32
    %c0_i32_1 = arith.constant 0 : i32
    return %c0_i32, %c0_i32_0 : i32, i32
  }
  func.func @transform_7(%arg0: i32) -> (i32, i32, i32) {
    %c0_i32 = arith.constant 0 : i32
    %c0_i32_0 = arith.constant 0 : i32
    %c0_i32_1 = arith.constant 0 : i32
    return %arg0, %c0_i32, %c0_i32_0 : i32, i32, i32
  }
}

</mosaic_0001>

<llo_original>
// kernel: simple_fcn_head_forward.1
$region0: #{simple_fcn_head_forward.1}
  #allocation0 [shape = 'u32[]', space=smem, size = 0x4, offset = 0x4, fixed_abs, tag = 'smem constant byte address 0x4 - core index']
  #allocation1 [shape = 'u32[72,128]{1,0:T(1,128)}', space=vmem, size = 0x9000, scoped, tag = 'internal scratch']
  #allocation2 [shape = 'f32[4,768]{1,0:T(4,128)}', space=vmem, size = 0x3000, scoped, tag = 'scratch operand']
  #allocation3 [shape = 'f32[8,768]{1,0:T(8,128)}', space=vmem, size = 0x6000, scoped, tag = 'scratch operand']
  #allocation4 [shape = 'f32[36,512]{1,0:T(8,128)}', space=vmem, size = 0x14000, scoped, tag = 'scratch operand']
  #allocation5 [shape = 'f32[72,512]{1,0:T(8,128)}', space=vmem, size = 0x24000, scoped, tag = 'scratch operand']
  %s0 = inlined_call_operand.vmem [shape: f32[4,4,256], index: 0, kind: input, shape index: {}]
  %s1 = inlined_call_operand.vmem [shape: f32[8,512], index: 1, kind: input, shape index: {}]
  %s2 = inlined_call_operand.vmem [shape: f32[8,36], index: 2, kind: input, shape index: {}]
  %s3 = inlined_call_operand.vmem [shape: f32[8,72], index: 3, kind: input, shape index: {}]
  %s4 = inlined_call_operand.vmem [shape: f32[19,1], index: 4, kind: input, shape index: {}]
  %s5 = inlined_call_operand.vmem [shape: f32[3,4], index: 5, kind: input, shape index: {}]
  %s6 = inlined_call_operand.vmem [shape: f32[3,8], index: 6, kind: input, shape index: {}]
  %s7 = inlined_call_operand.vmem [shape: f32[4,3,256], index: 7, kind: output, shape index: {}]
  %s8 = sld [smem:[#allocation0]]
  $region61: #{simple_fcn_head_forward.1} parent=0
    _
  %s10 = ssub.s32 1, %s8
  %s11 = scalar_select 0, %s10, %s8
  loop: start=0, step=1, limit=4
  $region2: #{simple_fcn_head_forward.1} parent=0 // loop_pre_header
    _
  $region3: #{simple_fcn_head_forward.1} parent=0 // loop_header
    %s13 = sphi 0, %s17
    %p14 = scmp.ge.s32.totalorder %s13, 4
    %s23 = sphi 0, %s25
    %s26 = sphi 0, %s23
    %s27 = sphi 0, %s26
    %s43 = sphi 0, %s27
    %s47 = sphi 0, %s47
    %s49 = sphi 0, %s47
    %s50 = sphi 0, %s49
    %s64 = sphi 0, %s50
    %s68 = sphi 0, %s68
    %s70 = sphi 0, %s68
    %s71 = sphi 0, %s70
    %s85 = sphi 0, %s71
    %s89 = sphi 0, %s89
    %s91 = sphi 0, %s89
    %s92 = sphi 0, %s91
    %s106 = sphi 0, %s92
    %s110 = sphi 0, %s110
    %s112 = sphi 0, %s110
    %s113 = sphi 0, %s112
    %s127 = sphi 0, %s113
    %s131 = sphi 0, %s131
    %s133 = sphi 0, %s131
    %s134 = sphi 0, %s133
    %s148 = sphi 0, %s134
    %s152 = sphi 0, %s152
    %s154 = sphi 0, %s152
    %s155 = sphi 0, %s154
    %s169 = sphi 0, %s155
    %s175 = sphi 0, %s177
    %s178 = sphi 0, %s175
    %s179 = sphi 0, %s178
    %s195 = sphi 0, %s179
  $region4: #{simple_fcn_head_forward.1} parent=0 // loop_header_branch
    %16 = sbr.rel (%p14) target = $region8
  $region5: #{simple_fcn_head_forward.1} parent=0 // loop_body
    %s18 = ssub.s32 %s13, 1
    %s19 = ssub.s32 %s13, 2
    %s20 = sadd.s32 %s13, 1
    %s21 = ssub.s32 %s13, %s20
    %p22 = scmp.eq.s32.totalorder %s21, 0
    %s24 = sadd.s32 %s23, 1
    %s25 = scalar_select %p22, %s23, %s24
    %p28 = pneg %p22
    %p29 = scmp.eq.s32.totalorder %s13, 1
    %p30 = por %p28, %p29
    %p31 = scmp.ne.s32.totalorder %s23, %s26
    %p32 = scmp.eq.s32.totalorder %s13, 0
    %p33 = por %p31, %p32
    %p34 = scmp.ne.s32.totalorder %s23, %s26
    %p35 = scmp.eq.s32.totalorder %s18, 1
    %p36 = por %p34, %p35
    %p37 = scmp.ne.s32.totalorder %s26, %s27
    %p38 = scmp.eq.s32.totalorder %s18, 0
    %p39 = por %p37, %p38
    %p40 = scmp.ne.s32.totalorder %s26, %s27
    %p41 = scmp.eq.s32.totalorder %s19, 1
    %p42 = por %p40, %p41
    %p44 = scmp.ne.s32.totalorder %s27, %s43
    %p45 = scmp.eq.s32.totalorder %s19, 0
    %p46 = por %p44, %p45
    %s48 = sadd.s32 %s47, 1
    %p51 = scmp.eq.s32.totalorder %s13, 1
    %p52 = scmp.ne.s32.totalorder %s47, %s49
    %p53 = scmp.eq.s32.totalorder %s13, 0
    %p54 = por %p52, %p53
    %p55 = scmp.ne.s32.totalorder %s47, %s49
    %p56 = scmp.eq.s32.totalorder %s18, 1
    %p57 = por %p55, %p56
    %p58 = scmp.ne.s32.totalorder %s49, %s50
    %p59 = scmp.eq.s32.totalorder %s18, 0
    %p60 = por %p58, %p59
    %p61 = scmp.ne.s32.totalorder %s49, %s50
    %p62 = scmp.eq.s32.totalorder %s19, 1
    %p63 = por %p61, %p62
    %p65 = scmp.ne.s32.totalorder %s50, %s64
    %p66 = scmp.eq.s32.totalorder %s19, 0
    %p67 = por %p65, %p66
    %s69 = sadd.s32 %s68, 1
    %p72 = scmp.eq.s32.totalorder %s13, 1
    %p73 = scmp.ne.s32.totalorder %s68, %s70
    %p74 = scmp.eq.s32.totalorder %s13, 0
    %p75 = por %p73, %p74
    %p76 = scmp.ne.s32.totalorder %s68, %s70
    %p77 = scmp.eq.s32.totalorder %s18, 1
    %p78 = por %p76, %p77
    %p79 = scmp.ne.s32.totalorder %s70, %s71
    %p80 = scmp.eq.s32.totalorder %s18, 0
    %p81 = por %p79, %p80
    %p82 = scmp.ne.s32.totalorder %s70, %s71
    %p83 = scmp.eq.s32.totalorder %s19, 1
    %p84 = por %p82, %p83
    %p86 = scmp.ne.s32.totalorder %s71, %s85
    %p87 = scmp.eq.s32.totalorder %s19, 0
    %p88 = por %p86, %p87
    %s90 = sadd.s32 %s89, 1
    %p93 = scmp.eq.s32.totalorder %s13, 1
    %p94 = scmp.ne.s32.totalorder %s89, %s91
    %p95 = scmp.eq.s32.totalorder %s13, 0
    %p96 = por %p94, %p95
    %p97 = scmp.ne.s32.totalorder %s89, %s91
    %p98 = scmp.eq.s32.totalorder %s18, 1
    %p99 = por %p97, %p98
    %p100 = scmp.ne.s32.totalorder %s91, %s92
    %p101 = scmp.eq.s32.totalorder %s18, 0
    %p102 = por %p100, %p101
    %p103 = scmp.ne.s32.totalorder %s91, %s92
    %p104 = scmp.eq.s32.totalorder %s19, 1
    %p105 = por %p103, %p104
    %p107 = scmp.ne.s32.totalorder %s92, %s106
    %p108 = scmp.eq.s32.totalorder %s19, 0
    %p109 = por %p107, %p108
    %s111 = sadd.s32 %s110, 1
    %p114 = scmp.eq.s32.totalorder %s13, 1
    %p115 = scmp.ne.s32.totalorder %s110, %s112
    %p116 = scmp.eq.s32.totalorder %s13, 0
    %p117 = por %p115, %p116
    %p118 = scmp.ne.s32.totalorder %s110, %s112
    %p119 = scmp.eq.s32.totalorder %s18, 1
    %p120 = por %p118, %p119
    %p121 = scmp.ne.s32.totalorder %s112, %s113
    %p122 = scmp.eq.s32.totalorder %s18, 0
    %p123 = por %p121, %p122
    %p124 = scmp.ne.s32.totalorder %s112, %s113
    %p125 = scmp.eq.s32.totalorder %s19, 1
    %p126 = por %p124, %p125
    %p128 = scmp.ne.s32.totalorder %s113, %s127
    %p129 = scmp.eq.s32.totalorder %s19, 0
    %p130 = por %p128, %p129
    %s132 = sadd.s32 %s131, 1
    %p135 = scmp.eq.s32.totalorder %s13, 1
    %p136 = scmp.ne.s32.totalorder %s131, %s133
    %p137 = scmp.eq.s32.totalorder %s13, 0
    %p138 = por %p136, %p137
    %p139 = scmp.ne.s32.totalorder %s131, %s133
    %p140 = scmp.eq.s32.totalorder %s18, 1
    %p141 = por %p139, %p140
    %p142 = scmp.ne.s32.totalorder %s133, %s134
    %p143 = scmp.eq.s32.totalorder %s18, 0
    %p144 = por %p142, %p143
    %p145 = scmp.ne.s32.totalorder %s133, %s134
    %p146 = scmp.eq.s32.totalorder %s19, 1
    %p147 = por %p145, %p146
    %p149 = scmp.ne.s32.totalorder %s134, %s148
    %p150 = scmp.eq.s32.totalorder %s19, 0
    %p151 = por %p149, %p150
    %s153 = sadd.s32 %s152, 1
    %p156 = scmp.eq.s32.totalorder %s13, 1
    %p157 = scmp.ne.s32.totalorder %s152, %s154
    %p158 = scmp.eq.s32.totalorder %s13, 0
    %p159 = por %p157, %p158
    %p160 = scmp.ne.s32.totalorder %s152, %s154
    %p161 = scmp.eq.s32.totalorder %s18, 1
    %p162 = por %p160, %p161
    %p163 = scmp.ne.s32.totalorder %s154, %s155
    %p164 = scmp.eq.s32.totalorder %s18, 0
    %p165 = por %p163, %p164
    %p166 = scmp.ne.s32.totalorder %s154, %s155
    %p167 = scmp.eq.s32.totalorder %s19, 1
    %p168 = por %p166, %p167
    %p170 = scmp.ne.s32.totalorder %s155, %s169
    %p171 = scmp.eq.s32.totalorder %s19, 0
    %p172 = por %p170, %p171
    %s173 = ssub.s32 %s13, %s20
    %p174 = scmp.eq.s32.totalorder %s173, 0
    %s176 = sadd.s32 %s175, 1
    %s177 = scalar_select %p174, %s175, %s176
    %p180 = pneg %p174
    %p181 = scmp.eq.s32.totalorder %s13, 1
    %p182 = por %p180, %p181
    %p183 = scmp.ne.s32.totalorder %s175, %s178
    %p184 = scmp.eq.s32.totalorder %s13, 0
    %p185 = por %p183, %p184
    %p186 = scmp.ne.s32.totalorder %s175, %s178
    %p187 = scmp.eq.s32.totalorder %s18, 1
    %p188 = por %p186, %p187
    %p189 = scmp.ne.s32.totalorder %s178, %s179
    %p190 = scmp.eq.s32.totalorder %s18, 0
    %p191 = por %p189, %p190
    %p192 = scmp.ne.s32.totalorder %s178, %s179
    %p193 = scmp.eq.s32.totalorder %s19, 1
    %p194 = por %p192, %p193
    %p196 = scmp.ne.s32.totalorder %s179, %s195
    %p197 = scmp.eq.s32.totalorder %s19, 0
    %p198 = por %p196, %p197
    %p199 = scmp.le.s32.totalorder 1, %s13
    %p200 = scmp.lt.s32.totalorder %s13, 3
    %p201 = pnand %p199, %p200
    %p202 = pneg %p201
    // Predicated region
    $region9: #{simple_fcn_head_forward.1} parent=5 // pred_check
      _
    $region10: #{simple_fcn_head_forward.1} parent=5 // pred_check_branch
      %204 = sbr.rel (%p201) target = $region12
    $region11: #{simple_fcn_head_forward.1} parent=5 // pred_region
      %s205 = ssub.s32 %s13, 1
      // Predicated region
      $region13: #{simple_fcn_head_forward.1} parent=11 // pred_check
        %p206 = pneg %p60
      $region14: #{simple_fcn_head_forward.1} parent=11 // pred_check_branch
        %208 = sbr.rel (%p206) target = $region16
      $region15: #{simple_fcn_head_forward.1} parent=11 // pred_region
        _
      $region16: #{simple_fcn_head_forward.1} parent=11 // pred_fallthru
        _
      // Predicated region
      $region17: #{simple_fcn_head_forward.1} parent=11 // pred_check
        %p209 = pneg %p81
      $region18: #{simple_fcn_head_forward.1} parent=11 // pred_check_branch
        %211 = sbr.rel (%p209) target = $region20
      $region19: #{simple_fcn_head_forward.1} parent=11 // pred_region
        _
      $region20: #{simple_fcn_head_forward.1} parent=11 // pred_fallthru
        _
      // Predicated region
      $region21: #{simple_fcn_head_forward.1} parent=11 // pred_check
        %p212 = pneg %p102
      $region22: #{simple_fcn_head_forward.1} parent=11 // pred_check_branch
        %214 = sbr.rel (%p212) target = $region24
      $region23: #{simple_fcn_head_forward.1} parent=11 // pred_region
        _
      $region24: #{simple_fcn_head_forward.1} parent=11 // pred_fallthru
        _
      // Predicated region
      $region25: #{simple_fcn_head_forward.1} parent=11 // pred_check
        %p215 = pneg %p123
      $region26: #{simple_fcn_head_forward.1} parent=11 // pred_check_branch
        %217 = sbr.rel (%p215) target = $region28
      $region27: #{simple_fcn_head_forward.1} parent=11 // pred_region
        _
      $region28: #{simple_fcn_head_forward.1} parent=11 // pred_fallthru
        _
      // Predicated region
      $region29: #{simple_fcn_head_forward.1} parent=11 // pred_check
        %p218 = pneg %p144
      $region30: #{simple_fcn_head_forward.1} parent=11 // pred_check_branch
        %220 = sbr.rel (%p218) target = $region32
      $region31: #{simple_fcn_head_forward.1} parent=11 // pred_region
        _
      $region32: #{simple_fcn_head_forward.1} parent=11 // pred_fallthru
        _
      // Predicated region
      $region33: #{simple_fcn_head_forward.1} parent=11 // pred_check
        %p221 = pneg %p165
      $region34: #{simple_fcn_head_forward.1} parent=11 // pred_check_branch
        %223 = sbr.rel (%p221) target = $region36
      $region35: #{simple_fcn_head_forward.1} parent=11 // pred_region
        _
      $region36: #{simple_fcn_head_forward.1} parent=11 // pred_fallthru
        _
    $region12: #{simple_fcn_head_forward.1} parent=5 // pred_fallthru
      _
    %p224 = scmp.lt.s32.totalorder %s13, 2
    // Predicated region
    $region37: #{simple_fcn_head_forward.1} parent=5 // pred_check
      %p225 = pneg %p224
    $region38: #{simple_fcn_head_forward.1} parent=5 // pred_check_branch
      %227 = sbr.rel (%p225) target = $region40
    $region39: #{simple_fcn_head_forward.1} parent=5 // pred_region
      // Predicated region
      $region41: #{simple_fcn_head_forward.1} parent=39 // pred_check
        %p228 = pneg %p33
      $region42: #{simple_fcn_head_forward.1} parent=39 // pred_check_branch
        %230 = sbr.rel (%p228) target = $region44
      $region43: #{simple_fcn_head_forward.1} parent=39 // pred_region
        %s231 = smul.u32 2, %s13
        %p232 = scmp.lt.s32.totalorder %s231, 3
        %s233 = scalar_select %p232, %s231, 3
        %s234 = smul.addr %s233, 2
        %s235 = smul.addr %s234, 4
        %s236 = scalar_lea.vmem %s0, %s235
        %s237 = smul.u32 2, %s13
      $region44: #{simple_fcn_head_forward.1} parent=39 // pred_fallthru
        _
    $region40: #{simple_fcn_head_forward.1} parent=5 // pred_fallthru
      _
    %p238 = scmp.le.s32.totalorder 1, %s13
    %p239 = scmp.lt.s32.totalorder %s13, 3
    %p240 = pnand %p238, %p239
    %p241 = pneg %p240
    // Predicated region
    $region45: #{simple_fcn_head_forward.1} parent=5 // pred_check
      _
    $region46: #{simple_fcn_head_forward.1} parent=5 // pred_check_branch
      %243 = sbr.rel (%p240) target = $region48
    $region47: #{simple_fcn_head_forward.1} parent=5 // pred_region
      %s244 = ssub.s32 %s13, 1
      %s245 = smul.u32 2, %s18
      %p246 = scmp.lt.s32.totalorder %s245, 3
      %s247 = scalar_select %p246, %s245, 3
      %s248 = smul.addr %s247, 2
      %s249 = smul.addr %s248, 4
      %s250 = scalar_lea.vmem %s0, %s249
      %p251 = pneg %p39
      %p252 = pneg %p36
      %p253 = pneg %p60
      %p254 = pneg %p57
      %p255 = pneg %p81
      %p256 = pneg %p78
      %p257 = pneg %p102
      %p258 = pneg %p99
      %p259 = pneg %p123
      %p260 = pneg %p120
      %p261 = pneg %p144
      %p262 = pneg %p141
      %p263 = pneg %p165
      %p264 = pneg %p162
      %p265 = pneg %p191
      %p266 = pneg %p188
      %s267 = smul.u32 2, %s18
      %p268 = scmp.lt.s32.totalorder %s267, 3
      %s269 = scalar_select %p268, %s267, 3
      %s270 = smul.addr %s269, 2
      %s271 = smul.addr %s270, 4
      %s272 = scalar_lea.vmem %s7, %s271
      %s273 = smul.u32 2, %s18
      %p274 = scmp.lt.s32.totalorder %s273, 3
      %s275 = scalar_select %p274, %s273, 3
      %s276 = smul.addr %s275, 2
      %s277 = smul.addr %s276, 4
      %s278 = scalar_lea.vmem %s0, %s277
      %s279 = smul.u32 2, %s18
      %s280 = smul.u32 2, %s18
      %p281 = scmp.lt.s32.totalorder %s280, 3
      %s282 = scalar_select %p281, %s280, 3
      %s283 = smul.addr %s282, 2
      %s284 = smul.addr %s283, 4
      %s285 = scalar_lea.vmem %s7, %s284
      %s286 = smul.u32 2, %s18
      %v287 = vld [vmem:[%s1] ss:$8 sm:$0xf]
      %s288 = scalar_lea.vmem %s1, 1
      %v289 = vld [vmem:[%s288] ss:$8 sm:$0xf]
      %s290 = scalar_lea.vmem %s1, 2
      %v291 = vld [vmem:[%s290] ss:$8 sm:$0xf]
      %s292 = scalar_lea.vmem %s1, 3
      %v293 = vld [vmem:[%s292] ss:$8 sm:$0xf]
      %s294 = scalar_lea.vmem %s1, 4
      %v295 = vld [vmem:[%s294] ss:$8 sm:$0xf]
      %s296 = scalar_lea.vmem %s1, 5
      %v297 = vld [vmem:[%s296] ss:$8 sm:$0xf]
      %s298 = scalar_lea.vmem %s1, 6
      %v299 = vld [vmem:[%s298] ss:$8 sm:$0xf]
      %s300 = scalar_lea.vmem %s1, 7
      %v301 = vld [vmem:[%s300] ss:$8 sm:$0xf]
      %302 = vst [vmem:[#allocation2] sm:$0xf] 0.0
      %303 = vst [vmem:[#allocation2 + $0x14] sm:$0xf] 0.0
      %v304 = vld [vmem:[%s278] sm:$0xff]
      %305 = vst [vmem:[#allocation2 + $0x4] sm:$0xff] %v304
      %s306 = scalar_lea.vmem %s278, 8
      %v307 = vld [vmem:[%s306] sm:$0xff]
      %308 = vst [vmem:[#allocation2 + $0xc] sm:$0xff] %v307
      %v309 = vld [vmem:[%s4] sm:$0xff]
      %v310 = vld [vmem:[#allocation2] sm:$0xff]
      %v311 = vld [vmem:[#allocation2 + $0x8] sm:$0xff]
      %v312 = vld [vmem:[#allocation2 + $0x10] sm:$0xf]
      %v314 = vperm.slane %v287, 0
      %v315 = vperm.slane %v287, 1
      %v316 = vperm.slane %v287, 2
      %v317 = vperm.slane %v287, 3
      %v318 = vrot.slane %v315, 4
      %v319 = vrot.slane %v317, 4
      %vm320 = vcmask 1043456
      %v321 = vsel %vm320, %v314, %v318
      %v322 = vsel %vm320, %v316, %v319
      %323 = vrot.lane.b32.xlu0 %v321, 111
      %v324 = vpop.permute.xlu0 %323
      %325 = vrot.lane.b32.xlu0 %v322, 111
      %v326 = vpop.permute.xlu0 %325
      %v327 = vrot.slane %v324, 4
      %v328 = vrot.slane %v326, 4
      %vm329 = vcmask 908288
      %v330 = vsel %vm329, %v327, %v324
      %v331 = vsel %vm320, %v327, %v328
      %v332 = vsel %vm329, %v331, %v326
      %v336 = vmul.f32 %v310, %v330
      %v337 = vmul.f32 %v311, %v332
      %v338 = vmul.f32 %v312, %v328
      %342 = vst [vmem:[#allocation1] ss:$2 sm:$0xff] %v336
      %s343 = scalar_lea.vmem [#allocation1], 16
      %344 = vst [vmem:[%s343] ss:$2 sm:$0xff] %v337
      %s345 = scalar_lea.vmem [#allocation1], 32
      %346 = vst [vmem:[%s345] ss:$2 sm:$0xff] %v338
      %v347 = vld.sshfl [vmem:[#allocation1] sm:$0xff pattern:$0x75316420]
      %v348 = vld.sshfl [vmem:[#allocation1 + $0x8] sm:$0xff pattern:$0x75316420]
      %v349 = vld.sshfl [vmem:[#allocation1 + $0x10] sm:$0xff pattern:$0x75316420]
      %v350 = vld.sshfl [vmem:[#allocation1 + $0x18] sm:$0xff pattern:$0x75316420]
      %v351 = vld.sshfl [vmem:[#allocation1 + $0x20] sm:$0xff pattern:$0x75316420]
      %352 = vrot.lane.b32.xlu0 %v347, 17
      %v353 = vpop.permute.xlu0 %352
      %354 = vrot.lane.b32.xlu0 %v348, 17
      %v355 = vpop.permute.xlu0 %354
      %356 = vrot.lane.b32.xlu0 %v349, 17
      %v357 = vpop.permute.xlu0 %356
      %358 = vrot.lane.b32.xlu0 %v350, 17
      %v359 = vpop.permute.xlu0 %358
      %360 = vrot.lane.b32.xlu0 %v351, 17
      %v361 = vpop.permute.xlu0 %360
      %vm362 = vcmask 138240
      %v363 = vsel %vm362, %v353, %v355
      %v364 = vsel %vm362, %v355, %v357
      %v365 = vsel %vm362, %v357, %v359
      %v366 = vsel %vm362, %v359, %v361
      %371 = vst [vmem:[#allocation4] sm:$0xf] %v363
      %372 = vst [vmem:[#allocation4 + $0x8] sm:$0xf] %v364
      %373 = vst [vmem:[#allocation4 + $0x10] sm:$0xf] %v365
      %374 = vst [vmem:[#allocation4 + $0x18] sm:$0xf] %v366
      %v375 = vld [vmem:[#allocation2] sm:$0xff]
      %v376 = vld [vmem:[#allocation2 + $0x8] sm:$0xff]
      %v377 = vld [vmem:[#allocation2 + $0x10] sm:$0xf]
      %v379 = vperm.slane %v289, 0
      %v380 = vperm.slane %v289, 1
      %v381 = vperm.slane %v289, 2
      %v382 = vperm.slane %v289, 3
      %v383 = vrot.slane %v380, 4
      %v384 = vrot.slane %v382, 4
      %v385 = vsel %vm320, %v379, %v383
      %v386 = vsel %vm320, %v381, %v384
      %387 = vrot.lane.b32.xlu0 %v385, 112
      %v388 = vpop.permute.xlu0 %387
      %389 = vrot.lane.b32.xlu0 %v386, 112
      %v390 = vpop.permute.xlu0 %389
      %v391 = vrot.slane %v388, 4
      %v392 = vrot.slane %v390, 4
      %vm393 = vcmask 916480
      %v394 = vsel %vm393, %v391, %v388
      %v395 = vsel %vm320, %v391, %v392
      %v396 = vsel %vm393, %v395, %v390
      %v400 = vmul.f32 %v375, %v394
      %v401 = vmul.f32 %v376, %v396
      %v402 = vmul.f32 %v377, %v392
      %s406 = scalar_lea.vmem [#allocation1], 1
      %407 = vst [vmem:[%s406] ss:$2 sm:$0xff] %v400
      %s408 = scalar_lea.vmem [#allocation1], 17
      %409 = vst [vmem:[%s408] ss:$2 sm:$0xff] %v401
      %s410 = scalar_lea.vmem [#allocation1], 33
      %411 = vst [vmem:[%s410] ss:$2 sm:$0xff] %v402
      %v412 = vld.sshfl [vmem:[#allocation1] sm:$0xff pattern:$0x75316420]
      %v413 = vld.sshfl [vmem:[#allocation1 + $0x8] sm:$0xff pattern:$0x75316420]
      %v414 = vld.sshfl [vmem:[#allocation1 + $0x10] sm:$0xff pattern:$0x75316420]
      %v415 = vld.sshfl [vmem:[#allocation1 + $0x18] sm:$0xff pattern:$0x75316420]
      %v416 = vld.sshfl [vmem:[#allocation1 + $0x20] sm:$0xff pattern:$0x75316420]
      %417 = vrot.lane.b32.xlu0 %v412, 16
      %v418 = vpop.permute.xlu0 %417
      %419 = vrot.lane.b32.xlu0 %v413, 16
      %v420 = vpop.permute.xlu0 %419
      %421 = vrot.lane.b32.xlu0 %v414, 16
      %v422 = vpop.permute.xlu0 %421
      %423 = vrot.lane.b32.xlu0 %v415, 16
      %v424 = vpop.permute.xlu0 %423
      %425 = vrot.lane.b32.xlu0 %v416, 16
      %v426 = vpop.permute.xlu0 %425
      %vm427 = vcmask 130048
      %v428 = vsel %vm427, %v418, %v420
      %v429 = vsel %vm427, %v420, %v422
      %v430 = vsel %vm427, %v422, %v424
      %v431 = vsel %vm427, %v424, %v426
      %436 = vst [vmem:[#allocation4] sm:$0xf0] %v428
      %437 = vst [vmem:[#allocation4 + $0x8] sm:$0xf0] %v429
      %438 = vst [vmem:[#allocation4 + $0x10] sm:$0xf0] %v430
      %439 = vst [vmem:[#allocation4 + $0x18] sm:$0xf0] %v431
      %v440 = vld [vmem:[#allocation2] sm:$0xff]
      %v441 = vld [vmem:[#allocation2 + $0x8] sm:$0xff]
      %v442 = vld [vmem:[#allocation2 + $0x10] sm:$0xf]
      %v444 = vperm.slane %v291, 0
      %v445 = vperm.slane %v291, 1
      %v446 = vperm.slane %v291, 2
      %v447 = vperm.slane %v291, 3
      %v448 = vrot.slane %v445, 4
      %v449 = vrot.slane %v447, 4
      %v450 = vsel %vm320, %v444, %v448
      %v451 = vsel %vm320, %v446, %v449
      %452 = vrot.lane.b32.xlu0 %v450, 113
      %v453 = vpop.permute.xlu0 %452
      %454 = vrot.lane.b32.xlu0 %v451, 113
      %v455 = vpop.permute.xlu0 %454
      %v456 = vrot.slane %v453, 4
      %v457 = vrot.slane %v455, 4
      %vm458 = vcmask 924672
      %v459 = vsel %vm458, %v456, %v453
      %v460 = vsel %vm320, %v456, %v457
      %v461 = vsel %vm458, %v460, %v455
      %v465 = vmul.f32 %v440, %v459
      %v466 = vmul.f32 %v441, %v461
      %v467 = vmul.f32 %v442, %v457
      %471 = vst [vmem:[#allocation1] ss:$2 sm:$0xff] %v465
      %s472 = scalar_lea.vmem [#allocation1], 16
      %473 = vst [vmem:[%s472] ss:$2 sm:$0xff] %v466
      %s474 = scalar_lea.vmem [#allocation1], 32
      %475 = vst [vmem:[%s474] ss:$2 sm:$0xff] %v467
      %v476 = vld.sshfl [vmem:[#allocation1] sm:$0xff pattern:$0x75316420]
      %v477 = vld.sshfl [vmem:[#allocation1 + $0x8] sm:$0xff pattern:$0x75316420]
      %v478 = vld.sshfl [vmem:[#allocation1 + $0x10] sm:$0xff pattern:$0x75316420]
      %v479 = vld.sshfl [vmem:[#allocation1 + $0x18] sm:$0xff pattern:$0x75316420]
      %v480 = vld.sshfl [vmem:[#allocation1 + $0x20] sm:$0xff pattern:$0x75316420]
      %481 = vrot.lane.b32.xlu0 %v476, 15
      %v482 = vpop.permute.xlu0 %481
      %483 = vrot.lane.b32.xlu0 %v477, 15
      %v484 = vpop.permute.xlu0 %483
      %485 = vrot.lane.b32.xlu0 %v478, 15
      %v486 = vpop.permute.xlu0 %485
      %487 = vrot.lane.b32.xlu0 %v479, 15
      %v488 = vpop.permute.xlu0 %487
      %489 = vrot.lane.b32.xlu0 %v480, 15
      %v490 = vpop.permute.xlu0 %489
      %vm491 = vcmask 121856
      %v492 = vsel %vm491, %v482, %v484
      %v493 = vsel %vm491, %v484, %v486
      %v494 = vsel %vm491, %v486, %v488
      %v495 = vsel %vm491, %v488, %v490
      %500 = vst [vmem:[#allocation4 + $0x20] sm:$0xf] %v492
      %501 = vst [vmem:[#allocation4 + $0x28] sm:$0xf] %v493
      %502 = vst [vmem:[#allocation4 + $0x30] sm:$0xf] %v494
      %503 = vst [vmem:[#allocation4 + $0x38] sm:$0xf] %v495
      %v504 = vld [vmem:[#allocation2] sm:$0xff]
      %v505 = vld [vmem:[#allocation2 + $0x8] sm:$0xff]
      %v506 = vld [vmem:[#allocation2 + $0x10] sm:$0xf]
      %v508 = vperm.slane %v293, 0
      %v509 = vperm.slane %v293, 1
      %v510 = vperm.slane %v293, 2
      %v511 = vperm.slane %v293, 3
      %v512 = vrot.slane %v509, 4
      %v513 = vrot.slane %v511, 4
      %v514 = vsel %vm320, %v508, %v512
      %v515 = vsel %vm320, %v510, %v513
      %516 = vrot.lane.b32.xlu0 %v514, 127
      %v517 = vpop.permute.xlu0 %516
      %518 = vrot.lane.b32.xlu0 %v515, 127
      %v519 = vpop.permute.xlu0 %518
      %v520 = vrot.slane %v517, 4
      %v521 = vrot.slane %v519, 4
      %vm522 = vcmask 1039360
      %v523 = vsel %vm522, %v520, %v517
      %v524 = vsel %vm320, %v520, %v521
      %v525 = vsel %vm522, %v524, %v519
      %v529 = vmul.f32 %v504, %v523
      %v530 = vmul.f32 %v505, %v525
      %v531 = vmul.f32 %v506, %v521
      %s535 = scalar_lea.vmem [#allocation1], 1
      %536 = vst [vmem:[%s535] ss:$2 sm:$0xff] %v529
      %s537 = scalar_lea.vmem [#allocation1], 17
      %538 = vst [vmem:[%s537] ss:$2 sm:$0xff] %v530
      %s539 = scalar_lea.vmem [#allocation1], 33
      %540 = vst [vmem:[%s539] ss:$2 sm:$0xff] %v531
      %v541 = vld.sshfl [vmem:[#allocation1] sm:$0xff pattern:$0x75316420]
      %v542 = vld.sshfl [vmem:[#allocation1 + $0x8] sm:$0xff pattern:$0x75316420]
      %v543 = vld.sshfl [vmem:[#allocation1 + $0x10] sm:$0xff pattern:$0x75316420]
      %v544 = vld.sshfl [vmem:[#allocation1 + $0x18] sm:$0xff pattern:$0x75316420]
      %v545 = vld.sshfl [vmem:[#allocation1 + $0x20] sm:$0xff pattern:$0x75316420]
      %546 = vrot.lane.b32.xlu0 %v541, 1
      %v547 = vpop.permute.xlu0 %546
      %548 = vrot.lane.b32.xlu0 %v542, 1
      %v549 = vpop.permute.xlu0 %548
      %550 = vrot.lane.b32.xlu0 %v543, 1
      %v551 = vpop.permute.xlu0 %550
      %552 = vrot.lane.b32.xlu0 %v544, 1
      %v553 = vpop.permute.xlu0 %552
      %554 = vrot.lane.b32.xlu0 %v545, 1
      %v555 = vpop.permute.xlu0 %554
      %vm556 = vcmask 7168
      %v557 = vsel %vm556, %v547, %v549
      %v558 = vsel %vm556, %v549, %v551
      %v559 = vsel %vm556, %v551, %v553
      %v560 = vsel %vm556, %v553, %v555
      %565 = vst [vmem:[#allocation4 + $0x20] sm:$0xf0] %v557
      %566 = vst [vmem:[#allocation4 + $0x28] sm:$0xf0] %v558
      %567 = vst [vmem:[#allocation4 + $0x30] sm:$0xf0] %v559
      %568 = vst [vmem:[#allocation4 + $0x38] sm:$0xf0] %v560
      %v569 = vld [vmem:[#allocation2 + $0x4] sm:$0xff]
      %v570 = vld [vmem:[#allocation2 + $0xc] sm:$0xff]
      %573 = vst [vmem:[#allocation1] ss:$2 sm:$0xff] %v569
      %s574 = scalar_lea.vmem [#allocation1], 16
      %575 = vst [vmem:[%s574] ss:$2 sm:$0xff] %v570
      %v576 = vld.sshfl [vmem:[#allocation1] sm:$0xff pattern:$0x75316420]
      %v577 = vld.sshfl [vmem:[#allocation1 + $0x8] sm:$0xff pattern:$0x75316420]
      %v578 = vld.sshfl [vmem:[#allocation1 + $0x10] sm:$0xff pattern:$0x75316420]
      %v579 = vld.sshfl [vmem:[#allocation1 + $0x18] sm:$0xff pattern:$0x75316420]
      %584 = vst [vmem:[#allocation4 + $0x40] sm:$0xf] %v576
      %585 = vst [vmem:[#allocation4 + $0x48] sm:$0xf] %v577
      %586 = vst [vmem:[#allocation4 + $0x50] sm:$0xf] %v578
      %587 = vst [vmem:[#allocation4 + $0x58] sm:$0xf] %v579
      %v588 = vld [vmem:[#allocation2 + $0x4] sm:$0xff]
      %v589 = vld [vmem:[#allocation2 + $0xc] sm:$0xff]
      %v590 = vld [vmem:[#allocation2 + $0x14] sm:$0xf]
      %v592 = vperm.slane %v295, 0
      %v593 = vperm.slane %v295, 1
      %v594 = vperm.slane %v295, 2
      %v595 = vperm.slane %v295, 3
      %v596 = vrot.slane %v593, 4
      %v597 = vrot.slane %v595, 4
      %v598 = vsel %vm320, %v592, %v596
      %v599 = vsel %vm320, %v594, %v597
      %600 = vrot.lane.b32.xlu0 %v598, 1
      %v601 = vpop.permute.xlu0 %600
      %602 = vrot.lane.b32.xlu0 %v599, 1
      %v603 = vpop.permute.xlu0 %602
      %v604 = vrot.slane %v601, 4
      %v605 = vrot.slane %v603, 4
      %v606 = vsel %vm556, %v604, %v601
      %v607 = vsel %vm320, %v604, %v605
      %v608 = vsel %vm556, %v607, %v603
      %v612 = vmul.f32 %v588, %v606
      %v613 = vmul.f32 %v589, %v608
      %v614 = vmul.f32 %v590, %v605
      %s618 = scalar_lea.vmem [#allocation1], 1
      %619 = vst [vmem:[%s618] ss:$2 sm:$0xff] %v612
      %s620 = scalar_lea.vmem [#allocation1], 17
      %621 = vst [vmem:[%s620] ss:$2 sm:$0xff] %v613
      %s622 = scalar_lea.vmem [#allocation1], 33
      %623 = vst [vmem:[%s622] ss:$2 sm:$0xff] %v614
      %v624 = vld.sshfl [vmem:[#allocation1] sm:$0xff pattern:$0x75316420]
      %v625 = vld.sshfl [vmem:[#allocation1 + $0x8] sm:$0xff pattern:$0x75316420]
      %v626 = vld.sshfl [vmem:[#allocation1 + $0x10] sm:$0xff pattern:$0x75316420]
      %v627 = vld.sshfl [vmem:[#allocation1 + $0x18] sm:$0xff pattern:$0x75316420]
      %v628 = vld.sshfl [vmem:[#allocation1 + $0x20] sm:$0xff pattern:$0x75316420]
      %629 = vrot.lane.b32.xlu0 %v624, 127
      %v630 = vpop.permute.xlu0 %629
      %631 = vrot.lane.b32.xlu0 %v625, 127
      %v632 = vpop.permute.xlu0 %631
      %633 = vrot.lane.b32.xlu0 %v626, 127
      %v634 = vpop.permute.xlu0 %633
      %635 = vrot.lane.b32.xlu0 %v627, 127
      %v636 = vpop.permute.xlu0 %635
      %637 = vrot.lane.b32.xlu0 %v628, 127
      %v638 = vpop.permute.xlu0 %637
      %v639 = vsel %vm522, %v630, %v632
      %v640 = vsel %vm522, %v632, %v634
      %v641 = vsel %vm522, %v634, %v636
      %v642 = vsel %vm522, %v636, %v638
      %647 = vst [vmem:[#allocation4 + $0x40] sm:$0xf0] %v639
      %648 = vst [vmem:[#allocation4 + $0x48] sm:$0xf0] %v640
      %649 = vst [vmem:[#allocation4 + $0x50] sm:$0xf0] %v641
      %650 = vst [vmem:[#allocation4 + $0x58] sm:$0xf0] %v642
      %v651 = vld [vmem:[#allocation2 + $0x4] sm:$0xff]
      %v652 = vld [vmem:[#allocation2 + $0xc] sm:$0xff]
      %v653 = vld [vmem:[#allocation2 + $0x14] sm:$0xf]
      %v655 = vperm.slane %v297, 0
      %v656 = vperm.slane %v297, 1
      %v657 = vperm.slane %v297, 2
      %v658 = vperm.slane %v297, 3
      %v659 = vrot.slane %v656, 4
      %v660 = vrot.slane %v658, 4
      %v661 = vsel %vm320, %v655, %v659
      %v662 = vsel %vm320, %v657, %v660
      %663 = vrot.lane.b32.xlu0 %v661, 15
      %v664 = vpop.permute.xlu0 %663
      %665 = vrot.lane.b32.xlu0 %v662, 15
      %v666 = vpop.permute.xlu0 %665
      %v667 = vrot.slane %v664, 4
      %v668 = vrot.slane %v666, 4
      %v669 = vsel %vm491, %v667, %v664
      %v670 = vsel %vm320, %v667, %v668
      %v671 = vsel %vm491, %v670, %v666
      %v675 = vmul.f32 %v651, %v669
      %v676 = vmul.f32 %v652, %v671
      %v677 = vmul.f32 %v653, %v668
      %681 = vst [vmem:[#allocation1] ss:$2 sm:$0xff] %v675
      %s682 = scalar_lea.vmem [#allocation1], 16
      %683 = vst [vmem:[%s682] ss:$2 sm:$0xff] %v676
      %s684 = scalar_lea.vmem [#allocation1], 32
      %685 = vst [vmem:[%s684] ss:$2 sm:$0xff] %v677
      %v686 = vld.sshfl [vmem:[#allocation1] sm:$0xff pattern:$0x75316420]
      %v687 = vld.sshfl [vmem:[#allocation1 + $0x8] sm:$0xff pattern:$0x75316420]
      %v688 = vld.sshfl [vmem:[#allocation1 + $0x10] sm:$0xff pattern:$0x75316420]
      %v689 = vld.sshfl [vmem:[#allocation1 + $0x18] sm:$0xff pattern:$0x75316420]
      %v690 = vld.sshfl [vmem:[#allocation1 + $0x20] sm:$0xff pattern:$0x75316420]
      %691 = vrot.lane.b32.xlu0 %v686, 113
      %v692 = vpop.permute.xlu0 %691
      %693 = vrot.lane.b32.xlu0 %v687, 113
      %v694 = vpop.permute.xlu0 %693
      %695 = vrot.lane.b32.xlu0 %v688, 113
      %v696 = vpop.permute.xlu0 %695
      %697 = vrot.lane.b32.xlu0 %v689, 113
      %v698 = vpop.permute.xlu0 %697
      %699 = vrot.lane.b32.xlu0 %v690, 113
      %v700 = vpop.permute.xlu0 %699
      %v701 = vsel %vm458, %v692, %v694
      %v702 = vsel %vm458, %v694, %v696
      %v703 = vsel %vm458, %v696, %v698
      %v704 = vsel %vm458, %v698, %v700
      %709 = vst [vmem:[#allocation4 + $0x60] sm:$0xf] %v701
      %710 = vst [vmem:[#allocation4 + $0x68] sm:$0xf] %v702
      %711 = vst [vmem:[#allocation4 + $0x70] sm:$0xf] %v703
      %712 = vst [vmem:[#allocation4 + $0x78] sm:$0xf] %v704
      %v713 = vld [vmem:[#allocation2 + $0x4] sm:$0xff]
      %v714 = vld [vmem:[#allocation2 + $0xc] sm:$0xff]
      %v715 = vld [vmem:[#allocation2 + $0x14] sm:$0xf]
      %v717 = vperm.slane %v299, 0
      %v718 = vperm.slane %v299, 1
      %v719 = vperm.slane %v299, 2
      %v720 = vperm.slane %v299, 3
      %v721 = vrot.slane %v718, 4
      %v722 = vrot.slane %v720, 4
      %v723 = vsel %vm320, %v717, %v721
      %v724 = vsel %vm320, %v719, %v722
      %725 = vrot.lane.b32.xlu0 %v723, 16
      %v726 = vpop.permute.xlu0 %725
      %727 = vrot.lane.b32.xlu0 %v724, 16
      %v728 = vpop.permute.xlu0 %727
      %v729 = vrot.slane %v726, 4
      %v730 = vrot.slane %v728, 4
      %v731 = vsel %vm427, %v729, %v726
      %v732 = vsel %vm320, %v729, %v730
      %v733 = vsel %vm427, %v732, %v728
      %v737 = vmul.f32 %v713, %v731
      %v738 = vmul.f32 %v714, %v733
      %v739 = vmul.f32 %v715, %v730
      %s743 = scalar_lea.vmem [#allocation1], 1
      %744 = vst [vmem:[%s743] ss:$2 sm:$0xff] %v737
      %s745 = scalar_lea.vmem [#allocation1], 17
      %746 = vst [vmem:[%s745] ss:$2 sm:$0xff] %v738
      %s747 = scalar_lea.vmem [#allocation1], 33
      %748 = vst [vmem:[%s747] ss:$2 sm:$0xff] %v739
      %v749 = vld.sshfl [vmem:[#allocation1] sm:$0xff pattern:$0x75316420]
      %v750 = vld.sshfl [vmem:[#allocation1 + $0x8] sm:$0xff pattern:$0x75316420]
      %v751 = vld.sshfl [vmem:[#allocation1 + $0x10] sm:$0xff pattern:$0x75316420]
      %v752 = vld.sshfl [vmem:[#allocation1 + $0x18] sm:$0xff pattern:$0x75316420]
      %v753 = vld.sshfl [vmem:[#allocation1 + $0x20] sm:$0xff pattern:$0x75316420]
      %754 = vrot.lane.b32.xlu0 %v749, 112
      %v755 = vpop.permute.xlu0 %754
      %756 = vrot.lane.b32.xlu0 %v750, 112
      %v757 = vpop.permute.xlu0 %756
      %758 = vrot.lane.b32.xlu0 %v751, 112
      %v759 = vpop.permute.xlu0 %758
      %760 = vrot.lane.b32.xlu0 %v752, 112
      %v761 = vpop.permute.xlu0 %760
      %762 = vrot.lane.b32.xlu0 %v753, 112
      %v763 = vpop.permute.xlu0 %762
      %v764 = vsel %vm393, %v755, %v757
      %v765 = vsel %vm393, %v757, %v759
      %v766 = vsel %vm393, %v759, %v761
      %v767 = vsel %vm393, %v761, %v763
      %772 = vst [vmem:[#allocation4 + $0x60] sm:$0xf0] %v764
      %773 = vst [vmem:[#allocation4 + $0x68] sm:$0xf0] %v765
      %774 = vst [vmem:[#allocation4 + $0x70] sm:$0xf0] %v766
      %775 = vst [vmem:[#allocation4 + $0x78] sm:$0xf0] %v767
      %v776 = vld [vmem:[#allocation2 + $0x4] sm:$0xff]
      %v777 = vld [vmem:[#allocation2 + $0xc] sm:$0xff]
      %v778 = vld [vmem:[#allocation2 + $0x14] sm:$0xf]
      %v780 = vperm.slane %v301, 0
      %v781 = vperm.slane %v301, 1
      %v782 = vperm.slane %v301, 2
      %v783 = vperm.slane %v301, 3
      %v784 = vrot.slane %v781, 4
      %v785 = vrot.slane %v783, 4
      %v786 = vsel %vm320, %v780, %v784
      %v787 = vsel %vm320, %v782, %v785
      %788 = vrot.lane.b32.xlu0 %v786, 17
      %v789 = vpop.permute.xlu0 %788
      %790 = vrot.lane.b32.xlu0 %v787, 17
      %v791 = vpop.permute.xlu0 %790
      %v792 = vrot.slane %v789, 4
      %v793 = vrot.slane %v791, 4
      %v794 = vsel %vm362, %v792, %v789
      %v795 = vsel %vm320, %v792, %v793
      %v796 = vsel %vm362, %v795, %v791
      %v800 = vmul.f32 %v776, %v794
      %v801 = vmul.f32 %v777, %v796
      %v802 = vmul.f32 %v778, %v793
      %806 = vst [vmem:[#allocation1] ss:$2 sm:$0xff] %v800
      %s807 = scalar_lea.vmem [#allocation1], 16
      %808 = vst [vmem:[%s807] ss:$2 sm:$0xff] %v801
      %s809 = scalar_lea.vmem [#allocation1], 32
      %810 = vst [vmem:[%s809] ss:$2 sm:$0xff] %v802
      %v811 = vld.sshfl [vmem:[#allocation1] sm:$0xff pattern:$0x75316420]
      %v812 = vld.sshfl [vmem:[#allocation1 + $0x8] sm:$0xff pattern:$0x75316420]
      %v813 = vld.sshfl [vmem:[#allocation1 + $0x10] sm:$0xff pattern:$0x75316420]
      %v814 = vld.sshfl [vmem:[#allocation1 + $0x18] sm:$0xff pattern:$0x75316420]
      %v815 = vld.sshfl [vmem:[#allocation1 + $0x20] sm:$0xff pattern:$0x75316420]
      %816 = vrot.lane.b32.xlu0 %v811, 111
      %v817 = vpop.permute.xlu0 %816
      %818 = vrot.lane.b32.xlu0 %v812, 111
      %v819 = vpop.permute.xlu0 %818
      %820 = vrot.lane.b32.xlu0 %v813, 111
      %v821 = vpop.permute.xlu0 %820
      %822 = vrot.lane.b32.xlu0 %v814, 111
      %v823 = vpop.permute.xlu0 %822
      %824 = vrot.lane.b32.xlu0 %v815, 111
      %v825 = vpop.permute.xlu0 %824
      %v826 = vsel %vm329, %v817, %v819
      %v827 = vsel %vm329, %v819, %v821
      %v828 = vsel %vm329, %v821, %v823
      %v829 = vsel %vm329, %v823, %v825
      %834 = vst [vmem:[#allocation4 + $0x80] sm:$0xf] %v826
      %835 = vst [vmem:[#allocation4 + $0x88] sm:$0xf] %v827
      %836 = vst [vmem:[#allocation4 + $0x90] sm:$0xf] %v828
      %837 = vst [vmem:[#allocation4 + $0x98] sm:$0xf] %v829
      %v838 = vld [vmem:[%s2] sm:$0xff]
      %v839 = vld [vmem:[#allocation4] sm:$0xff]
      %v840 = vld [vmem:[#allocation4 + $0x8] sm:$0xff]
      %v841 = vld [vmem:[#allocation4 + $0x10] sm:$0xff]
      %v842 = vld [vmem:[#allocation4 + $0x18] sm:$0xff]
      %v843 = vld [vmem:[#allocation4 + $0x20] sm:$0xff]
      %v844 = vld [vmem:[#allocation4 + $0x28] sm:$0xff]
      %v845 = vld [vmem:[#allocation4 + $0x30] sm:$0xff]
      %v846 = vld [vmem:[#allocation4 + $0x38] sm:$0xff]
      %v847 = vld [vmem:[#allocation4 + $0x40] sm:$0xff]
      %v848 = vld [vmem:[#allocation4 + $0x48] sm:$0xff]
      %v849 = vld [vmem:[#allocation4 + $0x50] sm:$0xff]
      %v850 = vld [vmem:[#allocation4 + $0x58] sm:$0xff]
      %v851 = vld [vmem:[#allocation4 + $0x60] sm:$0xff]
      %v852 = vld [vmem:[#allocation4 + $0x68] sm:$0xff]
      %v853 = vld [vmem:[#allocation4 + $0x70] sm:$0xff]
      %v854 = vld [vmem:[#allocation4 + $0x78] sm:$0xff]
      %v855 = vld [vmem:[#allocation4 + $0x80] sm:$0xf]
      %v856 = vld [vmem:[#allocation4 + $0x88] sm:$0xf]
      %v857 = vld [vmem:[#allocation4 + $0x90] sm:$0xf]
      %v858 = vld [vmem:[#allocation4 + $0x98] sm:$0xf]
      %860 = vset.pattern.permute.xlu0 0
      %861 = vperm.xlu0 %860, %v309
      %v862 = vpop.permute.xlu0 %861
      %vm864 = vcmask 293888
      %v866 = vsel %vm864, %v838, 0
      %v869 = vsel %vm320, %v855, 0
      %v872 = vsel %vm320, %v856, 0
      %v875 = vsel %vm320, %v857, 0
      %v878 = vsel %vm320, %v858, 0
      %880 = vmatpush.msra.mxu0 0.0
      %881 = vmatpush.msra.mxu0 0.0
      %882 = vmatpush.msra.mxu0 0.0
      %883 = vmatpush.msra.mxu0 0.0
      %884 = vmatpush.msra.mxu0 0.0
      %885 = vmatpush.msra.mxu0 0.0
      %886 = vmatpush.msra.mxu0 0.0
      %887 = vmatpush.msra.mxu0 0.0
      %888 = vmatpush.msra.mxu0 0.0
      %889 = vmatpush.msra.mxu0 0.0
      %890 = vmatpush.msra.mxu0 0.0
      %891 = vmatpush.msra.mxu0 %v869
      %892 = vmatpush.msra.mxu0 %v851
      %893 = vmatpush.msra.mxu0 %v847
      %894 = vmatpush.msra.mxu0 %v843
      %895 = vmatpush.msra.mxu0 %v839
      %896 = vmatmul.f32.gmra.mxu0 %v866
      %v897 = vpop.f32.mrf.mxu0
      %v898 = vadd.f32 %v862, %v897
      %899 = vdwg.mxu0
      %900 = vmatpush.msra.mxu0 0.0
      %901 = vmatpush.msra.mxu0 0.0
      %902 = vmatpush.msra.mxu0 0.0
      %903 = vmatpush.msra.mxu0 0.0
      %904 = vmatpush.msra.mxu0 0.0
      %905 = vmatpush.msra.mxu0 0.0
      %906 = vmatpush.msra.mxu0 0.0
      %907 = vmatpush.msra.mxu0 0.0
      %908 = vmatpush.msra.mxu0 0.0
      %909 = vmatpush.msra.mxu0 0.0
      %910 = vmatpush.msra.mxu0 0.0
      %911 = vmatpush.msra.mxu0 %v872
      %912 = vmatpush.msra.mxu0 %v852
      %913 = vmatpush.msra.mxu0 %v848
      %914 = vmatpush.msra.mxu0 %v844
      %915 = vmatpush.msra.mxu0 %v840
      %916 = vmatmul.f32.gmra.mxu0 %v866
      %v917 = vpop.f32.mrf.mxu0
      %v918 = vadd.f32 %v862, %v917
      %919 = vdwg.mxu0
      %920 = vmatpush.msra.mxu0 0.0
      %921 = vmatpush.msra.mxu0 0.0
      %922 = vmatpush.msra.mxu0 0.0
      %923 = vmatpush.msra.mxu0 0.0
      %924 = vmatpush.msra.mxu0 0.0
      %925 = vmatpush.msra.mxu0 0.0
      %926 = vmatpush.msra.mxu0 0.0
      %927 = vmatpush.msra.mxu0 0.0
      %928 = vmatpush.msra.mxu0 0.0
      %929 = vmatpush.msra.mxu0 0.0
      %930 = vmatpush.msra.mxu0 0.0
      %931 = vmatpush.msra.mxu0 %v875
      %932 = vmatpush.msra.mxu0 %v853
      %933 = vmatpush.msra.mxu0 %v849
      %934 = vmatpush.msra.mxu0 %v845
      %935 = vmatpush.msra.mxu0 %v841
      %936 = vmatmul.f32.gmra.mxu0 %v866
      %v937 = vpop.f32.mrf.mxu0
      %v938 = vadd.f32 %v862, %v937
      %939 = vdwg.mxu0
      %940 = vmatpush.msra.mxu0 0.0
      %941 = vmatpush.msra.mxu0 0.0
      %942 = vmatpush.msra.mxu0 0.0
      %943 = vmatpush.msra.mxu0 0.0
      %944 = vmatpush.msra.mxu0 0.0
      %945 = vmatpush.msra.mxu0 0.0
      %946 = vmatpush.msra.mxu0 0.0
      %947 = vmatpush.msra.mxu0 0.0
      %948 = vmatpush.msra.mxu0 0.0
      %949 = vmatpush.msra.mxu0 0.0
      %950 = vmatpush.msra.mxu0 0.0
      %951 = vmatpush.msra.mxu0 %v878
      %952 = vmatpush.msra.mxu0 %v854
      %953 = vmatpush.msra.mxu0 %v850
      %954 = vmatpush.msra.mxu0 %v846
      %955 = vmatpush.msra.mxu0 %v842
      %956 = vmatmul.f32.gmra.mxu0 %v866
      %v957 = vpop.f32.mrf.mxu0
      %v958 = vadd.f32 %v862, %v957
      %959 = vdwg.mxu0
      %v960 = vmax.f32 %v898, 0.0
      %v961 = vmax.f32 %v918, 0.0
      %v962 = vmax.f32 %v938, 0.0
      %v963 = vmax.f32 %v958, 0.0
      %964 = vst [vmem:[#allocation3] sm:$0xff] 0.0
      %965 = vst [vmem:[#allocation3 + $0x28] sm:$0xff] 0.0
      %966 = vst [vmem:[#allocation3 + $0x8] sm:$0xff] %v960
      %967 = vst [vmem:[#allocation3 + $0x10] sm:$0xff] %v961
      %968 = vst [vmem:[#allocation3 + $0x18] sm:$0xff] %v962
      %969 = vst [vmem:[#allocation3 + $0x20] sm:$0xff] %v963
      %v970 = vld [vmem:[%s4 + $0x8] sm:$0xff]
      %v971 = vld [vmem:[#allocation3] sm:$0xff]
      %v972 = vld [vmem:[#allocation3 + $0x8] sm:$0xff]
      %v973 = vld [vmem:[#allocation3 + $0x10] sm:$0xff]
      %v974 = vld [vmem:[#allocation3 + $0x18] sm:$0xff]
      %v975 = vld [vmem:[#allocation3 + $0x20] sm:$0xff]
      %976 = vrot.lane.b32.xlu0 %v314, 111
      %v977 = vpop.permute.xlu0 %976
      %978 = vrot.lane.b32.xlu0 %v315, 111
      %v979 = vpop.permute.xlu0 %978
      %980 = vrot.lane.b32.xlu0 %v316, 111
      %v981 = vpop.permute.xlu0 %980
      %982 = vrot.lane.b32.xlu0 %v317, 111
      %v983 = vpop.permute.xlu0 %982
      %v984 = vsel %vm329, %v977, %v979
      %v985 = vsel %vm329, %v979, %v981
      %v986 = vsel %vm329, %v981, %v983
      %v992 = vmul.f32 %v971, %v977
      %v993 = vmul.f32 %v972, %v984
      %v994 = vmul.f32 %v973, %v985
      %v995 = vmul.f32 %v974, %v986
      %v996 = vmul.f32 %v975, %v983
      %1002 = vrot.lane.b32.xlu0 %v992, 17
      %v1003 = vpop.permute.xlu0 %1002
      %1004 = vrot.lane.b32.xlu0 %v993, 17
      %v1005 = vpop.permute.xlu0 %1004
      %1006 = vrot.lane.b32.xlu0 %v994, 17
      %v1007 = vpop.permute.xlu0 %1006
      %1008 = vrot.lane.b32.xlu0 %v995, 17
      %v1009 = vpop.permute.xlu0 %1008
      %1010 = vrot.lane.b32.xlu0 %v996, 17
      %v1011 = vpop.permute.xlu0 %1010
      %v1012 = vsel %vm362, %v1003, %v1005
      %v1013 = vsel %vm362, %v1005, %v1007
      %v1014 = vsel %vm362, %v1007, %v1009
      %v1015 = vsel %vm362, %v1009, %v1011
      %1020 = vst [vmem:[#allocation5] sm:$0xff] %v1012
      %1021 = vst [vmem:[#allocation5 + $0x8] sm:$0xff] %v1013
      %1022 = vst [vmem:[#allocation5 + $0x10] sm:$0xff] %v1014
      %1023 = vst [vmem:[#allocation5 + $0x18] sm:$0xff] %v1015
      %v1024 = vld [vmem:[#allocation3] sm:$0xff]
      %v1025 = vld [vmem:[#allocation3 + $0x8] sm:$0xff]
      %v1026 = vld [vmem:[#allocation3 + $0x10] sm:$0xff]
      %v1027 = vld [vmem:[#allocation3 + $0x18] sm:$0xff]
      %v1028 = vld [vmem:[#allocation3 + $0x20] sm:$0xff]
      %1029 = vrot.lane.b32.xlu0 %v379, 112
      %v1030 = vpop.permute.xlu0 %1029
      %1031 = vrot.lane.b32.xlu0 %v380, 112
      %v1032 = vpop.permute.xlu0 %1031
      %1033 = vrot.lane.b32.xlu0 %v381, 112
      %v1034 = vpop.permute.xlu0 %1033
      %1035 = vrot.lane.b32.xlu0 %v382, 112
      %v1036 = vpop.permute.xlu0 %1035
      %v1037 = vsel %vm393, %v1030, %v1032
      %v1038 = vsel %vm393, %v1032, %v1034
      %v1039 = vsel %vm393, %v1034, %v1036
      %v1045 = vmul.f32 %v1024, %v1030
      %v1046 = vmul.f32 %v1025, %v1037
      %v1047 = vmul.f32 %v1026, %v1038
      %v1048 = vmul.f32 %v1027, %v1039
      %v1049 = vmul.f32 %v1028, %v1036
      %1055 = vrot.lane.b32.xlu0 %v1045, 16
      %v1056 = vpop.permute.xlu0 %1055
      %1057 = vrot.lane.b32.xlu0 %v1046, 16
      %v1058 = vpop.permute.xlu0 %1057
      %1059 = vrot.lane.b32.xlu0 %v1047, 16
      %v1060 = vpop.permute.xlu0 %1059
      %1061 = vrot.lane.b32.xlu0 %v1048, 16
      %v1062 = vpop.permute.xlu0 %1061
      %1063 = vrot.lane.b32.xlu0 %v1049, 16
      %v1064 = vpop.permute.xlu0 %1063
      %v1065 = vsel %vm427, %v1056, %v1058
      %v1066 = vsel %vm427, %v1058, %v1060
      %v1067 = vsel %vm427, %v1060, %v1062
      %v1068 = vsel %vm427, %v1062, %v1064
      %1073 = vst [vmem:[#allocation5 + $0x20] sm:$0xff] %v1065
      %1074 = vst [vmem:[#allocation5 + $0x28] sm:$0xff] %v1066
      %1075 = vst [vmem:[#allocation5 + $0x30] sm:$0xff] %v1067
      %1076 = vst [vmem:[#allocation5 + $0x38] sm:$0xff] %v1068
      %v1077 = vld [vmem:[#allocation3] sm:$0xff]
      %v1078 = vld [vmem:[#allocation3 + $0x8] sm:$0xff]
      %v1079 = vld [vmem:[#allocation3 + $0x10] sm:$0xff]
      %v1080 = vld [vmem:[#allocation3 + $0x18] sm:$0xff]
      %v1081 = vld [vmem:[#allocation3 + $0x20] sm:$0xff]
      %1082 = vrot.lane.b32.xlu0 %v444, 113
      %v1083 = vpop.permute.xlu0 %1082
      %1084 = vrot.lane.b32.xlu0 %v445, 113
      %v1085 = vpop.permute.xlu0 %1084
      %1086 = vrot.lane.b32.xlu0 %v446, 113
      %v1087 = vpop.permute.xlu0 %1086
      %1088 = vrot.lane.b32.xlu0 %v447, 113
      %v1089 = vpop.permute.xlu0 %1088
      %v1090 = vsel %vm458, %v1083, %v1085
      %v1091 = vsel %vm458, %v1085, %v1087
      %v1092 = vsel %vm458, %v1087, %v1089
      %v1098 = vmul.f32 %v1077, %v1083
      %v1099 = vmul.f32 %v1078, %v1090
      %v1100 = vmul.f32 %v1079, %v1091
      %v1101 = vmul.f32 %v1080, %v1092
      %v1102 = vmul.f32 %v1081, %v1089
      %1108 = vrot.lane.b32.xlu0 %v1098, 15
      %v1109 = vpop.permute.xlu0 %1108
      %1110 = vrot.lane.b32.xlu0 %v1099, 15
      %v1111 = vpop.permute.xlu0 %1110
      %1112 = vrot.lane.b32.xlu0 %v1100, 15
      %v1113 = vpop.permute.xlu0 %1112
      %1114 = vrot.lane.b32.xlu0 %v1101, 15
      %v1115 = vpop.permute.xlu0 %1114
      %1116 = vrot.lane.b32.xlu0 %v1102, 15
      %v1117 = vpop.permute.xlu0 %1116
      %v1118 = vsel %vm491, %v1109, %v1111
      %v1119 = vsel %vm491, %v1111, %v1113
      %v1120 = vsel %vm491, %v1113, %v1115
      %v1121 = vsel %vm491, %v1115, %v1117
      %1126 = vst [vmem:[#allocation5 + $0x40] sm:$0xff] %v1118
      %1127 = vst [vmem:[#allocation5 + $0x48] sm:$0xff] %v1119
      %1128 = vst [vmem:[#allocation5 + $0x50] sm:$0xff] %v1120
      %1129 = vst [vmem:[#allocation5 + $0x58] sm:$0xff] %v1121
      %v1130 = vld [vmem:[#allocation3] sm:$0xff]
      %v1131 = vld [vmem:[#allocation3 + $0x8] sm:$0xff]
      %v1132 = vld [vmem:[#allocation3 + $0x10] sm:$0xff]
      %v1133 = vld [vmem:[#allocation3 + $0x18] sm:$0xff]
      %v1134 = vld [vmem:[#allocation3 + $0x20] sm:$0xff]
      %1135 = vrot.lane.b32.xlu0 %v508, 127
      %v1136 = vpop.permute.xlu0 %1135
      %1137 = vrot.lane.b32.xlu0 %v509, 127
      %v1138 = vpop.permute.xlu0 %1137
      %1139 = vrot.lane.b32.xlu0 %v510, 127
      %v1140 = vpop.permute.xlu0 %1139
      %1141 = vrot.lane.b32.xlu0 %v511, 127
      %v1142 = vpop.permute.xlu0 %1141
      %v1143 = vsel %vm522, %v1136, %v1138
      %v1144 = vsel %vm522, %v1138, %v1140
      %v1145 = vsel %vm522, %v1140, %v1142
      %v1151 = vmul.f32 %v1130, %v1136
      %v1152 = vmul.f32 %v1131, %v1143
      %v1153 = vmul.f32 %v1132, %v1144
      %v1154 = vmul.f32 %v1133, %v1145
      %v1155 = vmul.f32 %v1134, %v1142
      %1161 = vrot.lane.b32.xlu0 %v1151, 1
      %v1162 = vpop.permute.xlu0 %1161
      %1163 = vrot.lane.b32.xlu0 %v1152, 1
      %v1164 = vpop.permute.xlu0 %1163
      %1165 = vrot.lane.b32.xlu0 %v1153, 1
      %v1166 = vpop.permute.xlu0 %1165
      %1167 = vrot.lane.b32.xlu0 %v1154, 1
      %v1168 = vpop.permute.xlu0 %1167
      %1169 = vrot.lane.b32.xlu0 %v1155, 1
      %v1170 = vpop.permute.xlu0 %1169
      %v1171 = vsel %vm556, %v1162, %v1164
      %v1172 = vsel %vm556, %v1164, %v1166
      %v1173 = vsel %vm556, %v1166, %v1168
      %v1174 = vsel %vm556, %v1168, %v1170
      %1179 = vst [vmem:[#allocation5 + $0x60] sm:$0xff] %v1171
      %1180 = vst [vmem:[#allocation5 + $0x68] sm:$0xff] %v1172
      %1181 = vst [vmem:[#allocation5 + $0x70] sm:$0xff] %v1173
      %1182 = vst [vmem:[#allocation5 + $0x78] sm:$0xff] %v1174
      %v1183 = vld [vmem:[#allocation3 + $0x8] sm:$0xff]
      %v1184 = vld [vmem:[#allocation3 + $0x10] sm:$0xff]
      %v1185 = vld [vmem:[#allocation3 + $0x18] sm:$0xff]
      %v1186 = vld [vmem:[#allocation3 + $0x20] sm:$0xff]
      %1187 = vst [vmem:[#allocation5 + $0x80] sm:$0xff] %v1183
      %1188 = vst [vmem:[#allocation5 + $0x88] sm:$0xff] %v1184
      %1189 = vst [vmem:[#allocation5 + $0x90] sm:$0xff] %v1185
      %1190 = vst [vmem:[#allocation5 + $0x98] sm:$0xff] %v1186
      %v1191 = vld [vmem:[#allocation3 + $0x8] sm:$0xff]
      %v1192 = vld [vmem:[#allocation3 + $0x10] sm:$0xff]
      %v1193 = vld [vmem:[#allocation3 + $0x18] sm:$0xff]
      %v1194 = vld [vmem:[#allocation3 + $0x20] sm:$0xff]
      %v1195 = vld [vmem:[#allocation3 + $0x28] sm:$0xff]
      %1196 = vrot.lane.b32.xlu0 %v592, 1
      %v1197 = vpop.permute.xlu0 %1196
      %1198 = vrot.lane.b32.xlu0 %v593, 1
      %v1199 = vpop.permute.xlu0 %1198
      %1200 = vrot.lane.b32.xlu0 %v594, 1
      %v1201 = vpop.permute.xlu0 %1200
      %1202 = vrot.lane.b32.xlu0 %v595, 1
      %v1203 = vpop.permute.xlu0 %1202
      %v1204 = vsel %vm556, %v1197, %v1199
      %v1205 = vsel %vm556, %v1199, %v1201
      %v1206 = vsel %vm556, %v1201, %v1203
      %v1212 = vmul.f32 %v1191, %v1197
      %v1213 = vmul.f32 %v1192, %v1204
      %v1214 = vmul.f32 %v1193, %v1205
      %v1215 = vmul.f32 %v1194, %v1206
      %v1216 = vmul.f32 %v1195, %v1203
      %1222 = vrot.lane.b32.xlu0 %v1212, 127
      %v1223 = vpop.permute.xlu0 %1222
      %1224 = vrot.lane.b32.xlu0 %v1213, 127
      %v1225 = vpop.permute.xlu0 %1224
      %1226 = vrot.lane.b32.xlu0 %v1214, 127
      %v1227 = vpop.permute.xlu0 %1226
      %1228 = vrot.lane.b32.xlu0 %v1215, 127
      %v1229 = vpop.permute.xlu0 %1228
      %1230 = vrot.lane.b32.xlu0 %v1216, 127
      %v1231 = vpop.permute.xlu0 %1230
      %v1232 = vsel %vm522, %v1223, %v1225
      %v1233 = vsel %vm522, %v1225, %v1227
      %v1234 = vsel %vm522, %v1227, %v1229
      %v1235 = vsel %vm522, %v1229, %v1231
      %1240 = vst [vmem:[#allocation5 + $0xa0] sm:$0xff] %v1232
      %1241 = vst [vmem:[#allocation5 + $0xa8] sm:$0xff] %v1233
      %1242 = vst [vmem:[#allocation5 + $0xb0] sm:$0xff] %v1234
      %1243 = vst [vmem:[#allocation5 + $0xb8] sm:$0xff] %v1235
      %v1244 = vld [vmem:[#allocation3 + $0x8] sm:$0xff]
      %v1245 = vld [vmem:[#allocation3 + $0x10] sm:$0xff]
      %v1246 = vld [vmem:[#allocation3 + $0x18] sm:$0xff]
      %v1247 = vld [vmem:[#allocation3 + $0x20] sm:$0xff]
      %v1248 = vld [vmem:[#allocation3 + $0x28] sm:$0xff]
      %1249 = vrot.lane.b32.xlu0 %v655, 15
      %v1250 = vpop.permute.xlu0 %1249
      %1251 = vrot.lane.b32.xlu0 %v656, 15
      %v1252 = vpop.permute.xlu0 %1251
      %1253 = vrot.lane.b32.xlu0 %v657, 15
      %v1254 = vpop.permute.xlu0 %1253
      %1255 = vrot.lane.b32.xlu0 %v658, 15
      %v1256 = vpop.permute.xlu0 %1255
      %v1257 = vsel %vm491, %v1250, %v1252
      %v1258 = vsel %vm491, %v1252, %v1254
      %v1259 = vsel %vm491, %v1254, %v1256
      %v1265 = vmul.f32 %v1244, %v1250
      %v1266 = vmul.f32 %v1245, %v1257
      %v1267 = vmul.f32 %v1246, %v1258
      %v1268 = vmul.f32 %v1247, %v1259
      %v1269 = vmul.f32 %v1248, %v1256
      %1275 = vrot.lane.b32.xlu0 %v1265, 113
      %v1276 = vpop.permute.xlu0 %1275
      %1277 = vrot.lane.b32.xlu0 %v1266, 113
      %v1278 = vpop.permute.xlu0 %1277
      %1279 = vrot.lane.b32.xlu0 %v1267, 113
      %v1280 = vpop.permute.xlu0 %1279
      %1281 = vrot.lane.b32.xlu0 %v1268, 113
      %v1282 = vpop.permute.xlu0 %1281
      %1283 = vrot.lane.b32.xlu0 %v1269, 113
      %v1284 = vpop.permute.xlu0 %1283
      %v1285 = vsel %vm458, %v1276, %v1278
      %v1286 = vsel %vm458, %v1278, %v1280
      %v1287 = vsel %vm458, %v1280, %v1282
      %v1288 = vsel %vm458, %v1282, %v1284
      %1293 = vst [vmem:[#allocation5 + $0xc0] sm:$0xff] %v1285
      %1294 = vst [vmem:[#allocation5 + $0xc8] sm:$0xff] %v1286
      %1295 = vst [vmem:[#allocation5 + $0xd0] sm:$0xff] %v1287
      %1296 = vst [vmem:[#allocation5 + $0xd8] sm:$0xff] %v1288
      %v1297 = vld [vmem:[#allocation3 + $0x8] sm:$0xff]
      %v1298 = vld [vmem:[#allocation3 + $0x10] sm:$0xff]
      %v1299 = vld [vmem:[#allocation3 + $0x18] sm:$0xff]
      %v1300 = vld [vmem:[#allocation3 + $0x20] sm:$0xff]
      %v1301 = vld [vmem:[#allocation3 + $0x28] sm:$0xff]
      %1302 = vrot.lane.b32.xlu0 %v717, 16
      %v1303 = vpop.permute.xlu0 %1302
      %1304 = vrot.lane.b32.xlu0 %v718, 16
      %v1305 = vpop.permute.xlu0 %1304
      %1306 = vrot.lane.b32.xlu0 %v719, 16
      %v1307 = vpop.permute.xlu0 %1306
      %1308 = vrot.lane.b32.xlu0 %v720, 16
      %v1309 = vpop.permute.xlu0 %1308
      %v1310 = vsel %vm427, %v1303, %v1305
      %v1311 = vsel %vm427, %v1305, %v1307
      %v1312 = vsel %vm427, %v1307, %v1309
      %v1318 = vmul.f32 %v1297, %v1303
      %v1319 = vmul.f32 %v1298, %v1310
      %v1320 = vmul.f32 %v1299, %v1311
      %v1321 = vmul.f32 %v1300, %v1312
      %v1322 = vmul.f32 %v1301, %v1309
      %1328 = vrot.lane.b32.xlu0 %v1318, 112
      %v1329 = vpop.permute.xlu0 %1328
      %1330 = vrot.lane.b32.xlu0 %v1319, 112
      %v1331 = vpop.permute.xlu0 %1330
      %1332 = vrot.lane.b32.xlu0 %v1320, 112
      %v1333 = vpop.permute.xlu0 %1332
      %1334 = vrot.lane.b32.xlu0 %v1321, 112
      %v1335 = vpop.permute.xlu0 %1334
      %1336 = vrot.lane.b32.xlu0 %v1322, 112
      %v1337 = vpop.permute.xlu0 %1336
      %v1338 = vsel %vm393, %v1329, %v1331
      %v1339 = vsel %vm393, %v1331, %v1333
      %v1340 = vsel %vm393, %v1333, %v1335
      %v1341 = vsel %vm393, %v1335, %v1337
      %1346 = vst [vmem:[#allocation5 + $0xe0] sm:$0xff] %v1338
      %1347 = vst [vmem:[#allocation5 + $0xe8] sm:$0xff] %v1339
      %1348 = vst [vmem:[#allocation5 + $0xf0] sm:$0xff] %v1340
      %1349 = vst [vmem:[#allocation5 + $0xf8] sm:$0xff] %v1341
      %v1350 = vld [vmem:[#allocation3 + $0x8] sm:$0xff]
      %v1351 = vld [vmem:[#allocation3 + $0x10] sm:$0xff]
      %v1352 = vld [vmem:[#allocation3 + $0x18] sm:$0xff]
      %v1353 = vld [vmem:[#allocation3 + $0x20] sm:$0xff]
      %v1354 = vld [vmem:[#allocation3 + $0x28] sm:$0xff]
      %1355 = vrot.lane.b32.xlu0 %v780, 17
      %v1356 = vpop.permute.xlu0 %1355
      %1357 = vrot.lane.b32.xlu0 %v781, 17
      %v1358 = vpop.permute.xlu0 %1357
      %1359 = vrot.lane.b32.xlu0 %v782, 17
      %v1360 = vpop.permute.xlu0 %1359
      %1361 = vrot.lane.b32.xlu0 %v783, 17
      %v1362 = vpop.permute.xlu0 %1361
      %v1363 = vsel %vm362, %v1356, %v1358
      %v1364 = vsel %vm362, %v1358, %v1360
      %v1365 = vsel %vm362, %v1360, %v1362
      %v1371 = vmul.f32 %v1350, %v1356
      %v1372 = vmul.f32 %v1351, %v1363
      %v1373 = vmul.f32 %v1352, %v1364
      %v1374 = vmul.f32 %v1353, %v1365
      %v1375 = vmul.f32 %v1354, %v1362
      %1381 = vrot.lane.b32.xlu0 %v1371, 111
      %v1382 = vpop.permute.xlu0 %1381
      %1383 = vrot.lane.b32.xlu0 %v1372, 111
      %v1384 = vpop.permute.xlu0 %1383
      %1385 = vrot.lane.b32.xlu0 %v1373, 111
      %v1386 = vpop.permute.xlu0 %1385
      %1387 = vrot.lane.b32.xlu0 %v1374, 111
      %v1388 = vpop.permute.xlu0 %1387
      %1389 = vrot.lane.b32.xlu0 %v1375, 111
      %v1390 = vpop.permute.xlu0 %1389
      %v1391 = vsel %vm329, %v1382, %v1384
      %v1392 = vsel %vm329, %v1384, %v1386
      %v1393 = vsel %vm329, %v1386, %v1388
      %v1394 = vsel %vm329, %v1388, %v1390
      %1399 = vst [vmem:[#allocation5 + $0x100] sm:$0xff] %v1391
      %1400 = vst [vmem:[#allocation5 + $0x108] sm:$0xff] %v1392
      %1401 = vst [vmem:[#allocation5 + $0x110] sm:$0xff] %v1393
      %1402 = vst [vmem:[#allocation5 + $0x118] sm:$0xff] %v1394
      %v1403 = vld [vmem:[%s3] sm:$0xff]
      %v1404 = vld [vmem:[#allocation5] sm:$0xff]
      %v1405 = vld [vmem:[#allocation5 + $0x8] sm:$0xff]
      %v1406 = vld [vmem:[#allocation5 + $0x10] sm:$0xff]
      %v1407 = vld [vmem:[#allocation5 + $0x18] sm:$0xff]
      %v1408 = vld [vmem:[#allocation5 + $0x20] sm:$0xff]
      %v1409 = vld [vmem:[#allocation5 + $0x28] sm:$0xff]
      %v1410 = vld [vmem:[#allocation5 + $0x30] sm:$0xff]
      %v1411 = vld [vmem:[#allocation5 + $0x38] sm:$0xff]
      %v1412 = vld [vmem:[#allocation5 + $0x40] sm:$0xff]
      %v1413 = vld [vmem:[#allocation5 + $0x48] sm:$0xff]
      %v1414 = vld [vmem:[#allocation5 + $0x50] sm:$0xff]
      %v1415 = vld [vmem:[#allocation5 + $0x58] sm:$0xff]
      %v1416 = vld [vmem:[#allocation5 + $0x60] sm:$0xff]
      %v1417 = vld [vmem:[#allocation5 + $0x68] sm:$0xff]
      %v1418 = vld [vmem:[#allocation5 + $0x70] sm:$0xff]
      %v1419 = vld [vmem:[#allocation5 + $0x78] sm:$0xff]
      %v1420 = vld [vmem:[#allocation5 + $0x80] sm:$0xff]
      %v1421 = vld [vmem:[#allocation5 + $0x88] sm:$0xff]
      %v1422 = vld [vmem:[#allocation5 + $0x90] sm:$0xff]
      %v1423 = vld [vmem:[#allocation5 + $0x98] sm:$0xff]
      %v1424 = vld [vmem:[#allocation5 + $0xa0] sm:$0xff]
      %v1425 = vld [vmem:[#allocation5 + $0xa8] sm:$0xff]
      %v1426 = vld [vmem:[#allocation5 + $0xb0] sm:$0xff]
      %v1427 = vld [vmem:[#allocation5 + $0xb8] sm:$0xff]
      %v1428 = vld [vmem:[#allocation5 + $0xc0] sm:$0xff]
      %v1429 = vld [vmem:[#allocation5 + $0xc8] sm:$0xff]
      %v1430 = vld [vmem:[#allocation5 + $0xd0] sm:$0xff]
      %v1431 = vld [vmem:[#allocation5 + $0xd8] sm:$0xff]
      %v1432 = vld [vmem:[#allocation5 + $0xe0] sm:$0xff]
      %v1433 = vld [vmem:[#allocation5 + $0xe8] sm:$0xff]
      %v1434 = vld [vmem:[#allocation5 + $0xf0] sm:$0xff]
      %v1435 = vld [vmem:[#allocation5 + $0xf8] sm:$0xff]
      %v1436 = vld [vmem:[#allocation5 + $0x100] sm:$0xff]
      %v1437 = vld [vmem:[#allocation5 + $0x108] sm:$0xff]
      %v1438 = vld [vmem:[#allocation5 + $0x110] sm:$0xff]
      %v1439 = vld [vmem:[#allocation5 + $0x118] sm:$0xff]
      %1441 = vset.pattern.permute.xlu0 0
      %1442 = vperm.xlu0 %1441, %v970
      %v1443 = vpop.permute.xlu0 %1442
      %vm1445 = vcmask 588800
      %v1447 = vsel %vm1445, %v1403, 0
      %1449 = vmatpush.msra.mxu0 0.0
      %1450 = vmatpush.msra.mxu0 0.0
      %1451 = vmatpush.msra.mxu0 0.0
      %1452 = vmatpush.msra.mxu0 0.0
      %1453 = vmatpush.msra.mxu0 0.0
      %1454 = vmatpush.msra.mxu0 0.0
      %1455 = vmatpush.msra.mxu0 0.0
      %1456 = vmatpush.msra.mxu0 %v1436
      %1457 = vmatpush.msra.mxu0 %v1432
      %1458 = vmatpush.msra.mxu0 %v1428
      %1459 = vmatpush.msra.mxu0 %v1424
      %1460 = vmatpush.msra.mxu0 %v1420
      %1461 = vmatpush.msra.mxu0 %v1416
      %1462 = vmatpush.msra.mxu0 %v1412
      %1463 = vmatpush.msra.mxu0 %v1408
      %1464 = vmatpush.msra.mxu0 %v1404
      %1465 = vmatmul.f32.gmra.mxu0 %v1447
      %v1466 = vpop.f32.mrf.mxu0
      %v1467 = vadd.f32 %v1443, %v1466
      %1468 = vdwg.mxu0
      %1469 = vmatpush.msra.mxu0 0.0
      %1470 = vmatpush.msra.mxu0 0.0
      %1471 = vmatpush.msra.mxu0 0.0
      %1472 = vmatpush.msra.mxu0 0.0
      %1473 = vmatpush.msra.mxu0 0.0
      %1474 = vmatpush.msra.mxu0 0.0
      %1475 = vmatpush.msra.mxu0 0.0
      %1476 = vmatpush.msra.mxu0 %v1437
      %1477 = vmatpush.msra.mxu0 %v1433
      %1478 = vmatpush.msra.mxu0 %v1429
      %1479 = vmatpush.msra.mxu0 %v1425
      %1480 = vmatpush.msra.mxu0 %v1421
      %1481 = vmatpush.msra.mxu0 %v1417
      %1482 = vmatpush.msra.mxu0 %v1413
      %1483 = vmatpush.msra.mxu0 %v1409
      %1484 = vmatpush.msra.mxu0 %v1405
      %1485 = vmatmul.f32.gmra.mxu0 %v1447
      %v1486 = vpop.f32.mrf.mxu0
      %v1487 = vadd.f32 %v1443, %v1486
      %1488 = vdwg.mxu0
      %1489 = vmatpush.msra.mxu0 0.0
      %1490 = vmatpush.msra.mxu0 0.0
      %1491 = vmatpush.msra.mxu0 0.0
      %1492 = vmatpush.msra.mxu0 0.0
      %1493 = vmatpush.msra.mxu0 0.0
      %1494 = vmatpush.msra.mxu0 0.0
      %1495 = vmatpush.msra.mxu0 0.0
      %1496 = vmatpush.msra.mxu0 %v1438
      %1497 = vmatpush.msra.mxu0 %v1434
      %1498 = vmatpush.msra.mxu0 %v1430
      %1499 = vmatpush.msra.mxu0 %v1426
      %1500 = vmatpush.msra.mxu0 %v1422
      %1501 = vmatpush.msra.mxu0 %v1418
      %1502 = vmatpush.msra.mxu0 %v1414
      %1503 = vmatpush.msra.mxu0 %v1410
      %1504 = vmatpush.msra.mxu0 %v1406
      %1505 = vmatmul.f32.gmra.mxu0 %v1447
      %v1506 = vpop.f32.mrf.mxu0
      %v1507 = vadd.f32 %v1443, %v1506
      %1508 = vdwg.mxu0
      %1509 = vmatpush.msra.mxu0 0.0
      %1510 = vmatpush.msra.mxu0 0.0
      %1511 = vmatpush.msra.mxu0 0.0
      %1512 = vmatpush.msra.mxu0 0.0
      %1513 = vmatpush.msra.mxu0 0.0
      %1514 = vmatpush.msra.mxu0 0.0
      %1515 = vmatpush.msra.mxu0 0.0
      %1516 = vmatpush.msra.mxu0 %v1439
      %1517 = vmatpush.msra.mxu0 %v1435
      %1518 = vmatpush.msra.mxu0 %v1431
      %1519 = vmatpush.msra.mxu0 %v1427
      %1520 = vmatpush.msra.mxu0 %v1423
      %1521 = vmatpush.msra.mxu0 %v1419
      %1522 = vmatpush.msra.mxu0 %v1415
      %1523 = vmatpush.msra.mxu0 %v1411
      %1524 = vmatpush.msra.mxu0 %v1407
      %1525 = vmatmul.f32.gmra.mxu0 %v1447
      %v1526 = vpop.f32.mrf.mxu0
      %v1527 = vadd.f32 %v1443, %v1526
      %1528 = vdwg.mxu0
      %v1529 = vmax.f32 %v1467, 0.0
      %v1530 = vmax.f32 %v1487, 0.0
      %v1531 = vmax.f32 %v1507, 0.0
      %v1532 = vmax.f32 %v1527, 0.0
      %v1533 = vld [vmem:[#allocation2 + $0x4] sm:$0xff]
      %v1534 = vld [vmem:[#allocation2 + $0xc] sm:$0xff]
      %v1535 = vld [vmem:[%s5] sm:$0x7]
      %v1536 = vld [vmem:[%s6] sm:$0x7]
      %vm1537 = vcmask 64512
      %v1539 = vsel %vm1537, %v1536, 0
      %1541 = vmatpush.msra.mxu0 0.0
      %1542 = vmatpush.msra.mxu0 0.0
      %1543 = vmatpush.msra.mxu0 0.0
      %1544 = vmatpush.msra.mxu0 0.0
      %1545 = vmatpush.msra.mxu0 0.0
      %1546 = vmatpush.msra.mxu0 0.0
      %1547 = vmatpush.msra.mxu0 0.0
      %1548 = vmatpush.msra.mxu0 0.0
      %1549 = vmatpush.msra.mxu0 0.0
      %1550 = vmatpush.msra.mxu0 0.0
      %1551 = vmatpush.msra.mxu0 0.0
      %1552 = vmatpush.msra.mxu0 0.0
      %1553 = vmatpush.msra.mxu0 0.0
      %1554 = vmatpush.msra.mxu0 0.0
      %1555 = vmatpush.msra.mxu0 0.0
      %1556 = vmatpush.msra.mxu0 %v1529
      %1557 = vmatmul.f32.gmra.mxu0 %v1539
      %v1558 = vpop.f32.mrf.mxu0
      %v1559 = vadd.f32 0.0, %v1558
      %1560 = vdwg.mxu0
      %1561 = vmatpush.msra.mxu0 0.0
      %1562 = vmatpush.msra.mxu0 0.0
      %1563 = vmatpush.msra.mxu0 0.0
      %1564 = vmatpush.msra.mxu0 0.0
      %1565 = vmatpush.msra.mxu0 0.0
      %1566 = vmatpush.msra.mxu0 0.0
      %1567 = vmatpush.msra.mxu0 0.0
      %1568 = vmatpush.msra.mxu0 0.0
      %1569 = vmatpush.msra.mxu0 0.0
      %1570 = vmatpush.msra.mxu0 0.0
      %1571 = vmatpush.msra.mxu0 0.0
      %1572 = vmatpush.msra.mxu0 0.0
      %1573 = vmatpush.msra.mxu0 0.0
      %1574 = vmatpush.msra.mxu0 0.0
      %1575 = vmatpush.msra.mxu0 0.0
      %1576 = vmatpush.msra.mxu0 %v1530
      %1577 = vmatmul.f32.gmra.mxu0 %v1539
      %v1578 = vpop.f32.mrf.mxu0
      %v1579 = vadd.f32 0.0, %v1578
      %1580 = vdwg.mxu0
      %1581 = vmatpush.msra.mxu0 0.0
      %1582 = vmatpush.msra.mxu0 0.0
      %1583 = vmatpush.msra.mxu0 0.0
      %1584 = vmatpush.msra.mxu0 0.0
      %1585 = vmatpush.msra.mxu0 0.0
      %1586 = vmatpush.msra.mxu0 0.0
      %1587 = vmatpush.msra.mxu0 0.0
      %1588 = vmatpush.msra.mxu0 0.0
      %1589 = vmatpush.msra.mxu0 0.0
      %1590 = vmatpush.msra.mxu0 0.0
      %1591 = vmatpush.msra.mxu0 0.0
      %1592 = vmatpush.msra.mxu0 0.0
      %1593 = vmatpush.msra.mxu0 0.0
      %1594 = vmatpush.msra.mxu0 0.0
      %1595 = vmatpush.msra.mxu0 0.0
      %1596 = vmatpush.msra.mxu0 %v1531
      %1597 = vmatmul.f32.gmra.mxu0 %v1539
      %v1598 = vpop.f32.mrf.mxu0
      %v1599 = vadd.f32 0.0, %v1598
      %1600 = vdwg.mxu0
      %1601 = vmatpush.msra.mxu0 0.0
      %1602 = vmatpush.msra.mxu0 0.0
      %1603 = vmatpush.msra.mxu0 0.0
      %1604 = vmatpush.msra.mxu0 0.0
      %1605 = vmatpush.msra.mxu0 0.0
      %1606 = vmatpush.msra.mxu0 0.0
      %1607 = vmatpush.msra.mxu0 0.0
      %1608 = vmatpush.msra.mxu0 0.0
      %1609 = vmatpush.msra.mxu0 0.0
      %1610 = vmatpush.msra.mxu0 0.0
      %1611 = vmatpush.msra.mxu0 0.0
      %1612 = vmatpush.msra.mxu0 0.0
      %1613 = vmatpush.msra.mxu0 0.0
      %1614 = vmatpush.msra.mxu0 0.0
      %1615 = vmatpush.msra.mxu0 0.0
      %1616 = vmatpush.msra.mxu0 %v1532
      %1617 = vmatmul.f32.gmra.mxu0 %v1539
      %v1618 = vpop.f32.mrf.mxu0
      %v1619 = vadd.f32 0.0, %v1618
      %1620 = vdwg.mxu0
      %1623 = vst [vmem:[#allocation1] ss:$2 sm:$0xff] %v1533
      %s1624 = scalar_lea.vmem [#allocation1], 16
      %1625 = vst [vmem:[%s1624] ss:$2 sm:$0xff] %v1534
      %v1626 = vld.sshfl [vmem:[#allocation1] sm:$0xff pattern:$0x75316420]
      %v1627 = vld.sshfl [vmem:[#allocation1 + $0x8] sm:$0xff pattern:$0x75316420]
      %v1628 = vld.sshfl [vmem:[#allocation1 + $0x10] sm:$0xff pattern:$0x75316420]
      %v1629 = vld.sshfl [vmem:[#allocation1 + $0x18] sm:$0xff pattern:$0x75316420]
      %vm1630 = vcmask 31744
      %v1632 = vsel %vm1630, %v1535, 0
      %v1634 = vsel %vm320, %v1626, 0
      %v1636 = vsel %vm320, %v1627, 0
      %v1638 = vsel %vm320, %v1628, 0
      %v1640 = vsel %vm320, %v1629, 0
      %1642 = vmatpush.msra.mxu0 0.0
      %1643 = vmatpush.msra.mxu0 0.0
      %1644 = vmatpush.msra.mxu0 0.0
      %1645 = vmatpush.msra.mxu0 0.0
      %1646 = vmatpush.msra.mxu0 0.0
      %1647 = vmatpush.msra.mxu0 0.0
      %1648 = vmatpush.msra.mxu0 0.0
      %1649 = vmatpush.msra.mxu0 0.0
      %1650 = vmatpush.msra.mxu0 0.0
      %1651 = vmatpush.msra.mxu0 0.0
      %1652 = vmatpush.msra.mxu0 0.0
      %1653 = vmatpush.msra.mxu0 0.0
      %1654 = vmatpush.msra.mxu0 0.0
      %1655 = vmatpush.msra.mxu0 0.0
      %1656 = vmatpush.msra.mxu0 0.0
      %1657 = vmatpush.msra.mxu0 %v1634
      %1658 = vmatmul.f32.gmra.mxu0 %v1632
      %v1659 = vpop.f32.mrf.mxu0
      %v1660 = vadd.f32 %v1559, %v1659
      %1661 = vdwg.mxu0
      %1662 = vmatpush.msra.mxu0 0.0
      %1663 = vmatpush.msra.mxu0 0.0
      %1664 = vmatpush.msra.mxu0 0.0
      %1665 = vmatpush.msra.mxu0 0.0
      %1666 = vmatpush.msra.mxu0 0.0
      %1667 = vmatpush.msra.mxu0 0.0
      %1668 = vmatpush.msra.mxu0 0.0
      %1669 = vmatpush.msra.mxu0 0.0
      %1670 = vmatpush.msra.mxu0 0.0
      %1671 = vmatpush.msra.mxu0 0.0
      %1672 = vmatpush.msra.mxu0 0.0
      %1673 = vmatpush.msra.mxu0 0.0
      %1674 = vmatpush.msra.mxu0 0.0
      %1675 = vmatpush.msra.mxu0 0.0
      %1676 = vmatpush.msra.mxu0 0.0
      %1677 = vmatpush.msra.mxu0 %v1636
      %1678 = vmatmul.f32.gmra.mxu0 %v1632
      %v1679 = vpop.f32.mrf.mxu0
      %v1680 = vadd.f32 %v1579, %v1679
      %1681 = vdwg.mxu0
      %1682 = vmatpush.msra.mxu0 0.0
      %1683 = vmatpush.msra.mxu0 0.0
      %1684 = vmatpush.msra.mxu0 0.0
      %1685 = vmatpush.msra.mxu0 0.0
      %1686 = vmatpush.msra.mxu0 0.0
      %1687 = vmatpush.msra.mxu0 0.0
      %1688 = vmatpush.msra.mxu0 0.0
      %1689 = vmatpush.msra.mxu0 0.0
      %1690 = vmatpush.msra.mxu0 0.0
      %1691 = vmatpush.msra.mxu0 0.0
      %1692 = vmatpush.msra.mxu0 0.0
      %1693 = vmatpush.msra.mxu0 0.0
      %1694 = vmatpush.msra.mxu0 0.0
      %1695 = vmatpush.msra.mxu0 0.0
      %1696 = vmatpush.msra.mxu0 0.0
      %1697 = vmatpush.msra.mxu0 %v1638
      %1698 = vmatmul.f32.gmra.mxu0 %v1632
      %v1699 = vpop.f32.mrf.mxu0
      %v1700 = vadd.f32 %v1599, %v1699
      %1701 = vdwg.mxu0
      %1702 = vmatpush.msra.mxu0 0.0
      %1703 = vmatpush.msra.mxu0 0.0
      %1704 = vmatpush.msra.mxu0 0.0
      %1705 = vmatpush.msra.mxu0 0.0
      %1706 = vmatpush.msra.mxu0 0.0
      %1707 = vmatpush.msra.mxu0 0.0
      %1708 = vmatpush.msra.mxu0 0.0
      %1709 = vmatpush.msra.mxu0 0.0
      %1710 = vmatpush.msra.mxu0 0.0
      %1711 = vmatpush.msra.mxu0 0.0
      %1712 = vmatpush.msra.mxu0 0.0
      %1713 = vmatpush.msra.mxu0 0.0
      %1714 = vmatpush.msra.mxu0 0.0
      %1715 = vmatpush.msra.mxu0 0.0
      %1716 = vmatpush.msra.mxu0 0.0
      %1717 = vmatpush.msra.mxu0 %v1640
      %1718 = vmatmul.f32.gmra.mxu0 %v1632
      %v1719 = vpop.f32.mrf.mxu0
      %v1720 = vadd.f32 %v1619, %v1719
      %1721 = vdwg.mxu0
      %v1722 = vld [vmem:[%s4 + $0x10] sm:$0x7]
      %1724 = vset.pattern.permute.xlu0 0
      %1725 = vperm.xlu0 %1724, %v1722
      %v1726 = vpop.permute.xlu0 %1725
      %v1728 = vadd.f32 %v1660, %v1726
      %v1729 = vadd.f32 %v1680, %v1726
      %v1730 = vadd.f32 %v1700, %v1726
      %v1731 = vadd.f32 %v1720, %v1726
      %v1734 = vrot.slane %v1729, 4
      %v1735 = vsel %vm320, %v1728, %v1734
      %1737 = vst [vmem:[%s285] sm:$0x77] %v1735
      %v1740 = vrot.slane %v1731, 4
      %v1741 = vsel %vm320, %v1730, %v1740
      %s1743 = scalar_lea.vmem %s285, 8
      %1744 = vst [vmem:[%s1743] sm:$0x77] %v1741
      %s1745 = smul.u32 2, %s18
      %p1746 = scmp.lt.s32.totalorder %s1745, 3
      %s1747 = scalar_select %p1746, %s1745, 3
      %s1748 = smul.addr %s1747, 2
      %s1749 = smul.addr %s1748, 4
      %s1750 = scalar_lea.vmem %s7, %s1749
      // Predicated region
      $region49: #{simple_fcn_head_forward.1} parent=47 // pred_check
        %p1751 = pneg %p188
      $region50: #{simple_fcn_head_forward.1} parent=47 // pred_check_branch
        %1753 = sbr.rel (%p1751) target = $region52
      $region51: #{simple_fcn_head_forward.1} parent=47 // pred_region
        %s1754 = smul.u32 2, %s18
      $region52: #{simple_fcn_head_forward.1} parent=47 // pred_fallthru
        _
    $region48: #{simple_fcn_head_forward.1} parent=5 // pred_fallthru
      _
    %p1755 = scmp.le.s32.totalorder 2, %s13
    // Predicated region
    $region53: #{simple_fcn_head_forward.1} parent=5 // pred_check
      %p1756 = pneg %p1755
    $region54: #{simple_fcn_head_forward.1} parent=5 // pred_check_branch
      %1758 = sbr.rel (%p1756) target = $region56
    $region55: #{simple_fcn_head_forward.1} parent=5 // pred_region
      %s1759 = ssub.s32 %s13, 2
      // Predicated region
      $region57: #{simple_fcn_head_forward.1} parent=55 // pred_check
        %p1760 = pneg %p194
      $region58: #{simple_fcn_head_forward.1} parent=55 // pred_check_branch
        %1762 = sbr.rel (%p1760) target = $region60
      $region59: #{simple_fcn_head_forward.1} parent=55 // pred_region
        %s1763 = smul.u32 2, %s19
        %p1764 = scmp.lt.s32.totalorder %s1763, 3
        %s1765 = scalar_select %p1764, %s1763, 3
        %s1766 = smul.addr %s1765, 2
        %s1767 = smul.addr %s1766, 4
        %s1768 = scalar_lea.vmem %s7, %s1767
      $region60: #{simple_fcn_head_forward.1} parent=55 // pred_fallthru
        _
    $region56: #{simple_fcn_head_forward.1} parent=5 // pred_fallthru
      _
  $region6: #{simple_fcn_head_forward.1} parent=0 // loop_footer
    %s17 = sadd.s32 1, %s13
  $region7: #{simple_fcn_head_forward.1} parent=0 // loop_footer_branch
    %12 = sbr.rel target = $region3
  $region8: #{simple_fcn_head_forward.1} parent=0 // loop_exit
    _

</llo_original>
